<compile_context>
chip_gen: v7x
topology: tpu7x:2x2x1
jax: 0.10.0
libtpu: 0.0.40
codegen_flags: <defaults>
</compile_context>

<pallas_src>
import functools

import jax
import jax.numpy as jnp
import numpy as np
from jax.experimental import pallas as pl
from jax.experimental.pallas import tpu as pltpu


def _round_up(v, m):
    return (v + m - 1) // m * m


def _vmem_capacity_bytes():
    try:
        return int(pltpu.get_tpu_info().vmem_capacity_bytes)
    except Exception:
        return 64 << 20  # conservative fallback: v7x per-TensorCore VMEM


# ---------------------------------------------------------------------------
# Kernel: one grid step processes a block of BB batch elements.
# ---------------------------------------------------------------------------
def _wgcn_kernel(x_ref, w_ref, adje_ref, cbias_ref, o_ref, t_ref,
                 *, bb, n_pad, reorder):
    # x_ref:     (BB*N_p, Cin_p)   compute dtype (batch folded into rows)
    # w_ref:     (Cin_p, Cout_p)   compute dtype, grid-invariant
    # adje_ref:  (N_p, N_p)        compute dtype, grid-invariant (adj_w * adj)
    # cbias_ref: (N_p, Cout_p)     f32, grid-invariant (rowsum(adj_eff) x lin_b + bias)
    # o_ref:     (BB*N_p, Cout_p)  output dtype
    # t_ref:     VMEM scratch for the inter-matmul intermediate
    adje = adje_ref[...]
    w = w_ref[...]
    cbias = cbias_ref[...]
    cout_p = cbias.shape[-1]

    if reorder:
        # Stage 1: per-batch aggregation t_b = adj_eff @ x_b (contracts over N,
        # width Cin_p < Cout_p).  Staged through VMEM scratch so register
        # pressure stays bounded across the unrolled loop.
        def agg(b, carry):
            row = pl.multiple_of(b * n_pad, n_pad)
            xb = x_ref[pl.ds(row, n_pad), :]
            tb = jnp.dot(adje, xb, preferred_element_type=jnp.float32)
            t_ref[pl.ds(row, n_pad), :] = tb.astype(t_ref.dtype)
            return carry

        jax.lax.fori_loop(0, bb, agg, None, unroll=True)

        # Stage 2: one wide linear matmul over all BB*N_p rows, then the folded
        # bias (broadcast across the batch block) in f32.
        out = jnp.dot(t_ref[...], w, preferred_element_type=jnp.float32)
        out = out.reshape(bb, n_pad, cout_p) + cbias[None]
        o_ref[...] = out.reshape(bb * n_pad, cout_p).astype(o_ref.dtype)
    else:
        # Stage 1: one wide linear matmul h = x @ W^T (lin_b folded into cbias),
        # staged through VMEM scratch.
        t_ref[...] = jnp.dot(
            x_ref[...], w, preferred_element_type=jnp.float32
        ).astype(t_ref.dtype)

        # Stage 2: per-batch aggregation o_b = adj_eff @ h_b + cbias.
        def agg(b, carry):
            row = pl.multiple_of(b * n_pad, n_pad)
            hb = t_ref[pl.ds(row, n_pad), :]
            ob = jnp.dot(adje, hb, preferred_element_type=jnp.float32) + cbias
            o_ref[pl.ds(row, n_pad), :] = ob.astype(o_ref.dtype)
            return carry

        jax.lax.fori_loop(0, bb, agg, None, unroll=True)


# ---------------------------------------------------------------------------
# Wrapper
# ---------------------------------------------------------------------------
def dense_wgcn(x, lin_w, lin_b, adj, adj_w, bias, *,
               compute_dtype=jnp.bfloat16, reorder=None,
               invariant_single_buffer=True):
    """DenseWGCN forward.

    x:      [B, N, Cin]
    lin_w:  [Cout, Cin]  (torch nn.Linear weight layout)
    lin_b:  [Cout]
    adj:    [1, N, N] or [N, N]  binary adjacency (diag = 1)
    adj_w:  [1, N, N] or [N, N]  learnable adjacency weights (diag = 1)
    bias:   [Cout] or None
    Returns [B, N, Cout] in x.dtype.
    """
    B, N, Cin = x.shape
    Cout = lin_w.shape[0]
    out_dtype = x.dtype

    adj2 = adj[0] if adj.ndim == 3 else adj
    adjw2 = adj_w[0] if adj_w.ndim == 3 else adj_w
    adj_eff = (adjw2 * adj2).astype(jnp.float32)      # precomputed ONCE

    # Lane-dense padding: N is the adjacency contraction dim -> 128-multiple;
    # channel dims -> 128-multiples.  (Zero padding is annihilated by the zero
    # rows/cols of adj_p before the final slice, so it is numerically exact.)
    N_p = _round_up(N, 128)
    Cin_p = _round_up(Cin, 128)
    Cout_p = _round_up(Cout, 128)

    if reorder is None:
        # Contract the adjacency matmul over the narrower padded channel dim.
        reorder = Cin_p < Cout_p

    cdt = np.dtype(compute_dtype)

    # Padded compute-dtype operands (halves VMEM/HBM footprint for bf16).
    w_p = jnp.zeros((Cin_p, Cout_p), cdt).at[:Cin, :Cout].set(
        jnp.transpose(lin_w).astype(cdt))
    adj_p = jnp.zeros((N_p, N_p), cdt).at[:N, :N].set(adj_eff.astype(cdt))

    # Folded bias slab (kept in f32): rowsum(adj_eff) (x) lin_b + bias.
    rowsum = jnp.sum(adj_eff, axis=-1)                               # (N,)
    cb = rowsum[:, None] * lin_b.astype(jnp.float32)[None, :]
    if bias is not None:
        cb = cb + bias.astype(jnp.float32)[None, :]
    cbias_p = jnp.zeros((N_p, Cout_p), jnp.float32).at[:N, :Cout].set(cb)

    x_p = jnp.zeros((B, N_p, Cin_p), cdt).at[:, :N, :Cin].set(x.astype(cdt))
    x2 = x_p.reshape(B * N_p, Cin_p)

    # ---- choose batch block BB from the per-generation VMEM budget ---------
    vmem_cap = _vmem_capacity_bytes()
    c_sz = cdt.itemsize
    o_sz = np.dtype(out_dtype).itemsize
    scr_cols = Cin_p if reorder else Cout_p
    inv_bufs = 1 if invariant_single_buffer else 2

    def est_bytes(bb):
        b = (2 * bb * N_p * Cin_p * c_sz               # x block (double-buffered)
             + 2 * bb * N_p * Cout_p * o_sz            # out block (double-buffered)
             + inv_bufs * (Cin_p * Cout_p + N_p * N_p) * c_sz   # W, adj_eff
             + inv_bufs * N_p * Cout_p * 4             # cbias (f32)
             + bb * N_p * scr_cols * c_sz              # intermediate scratch
             + bb * N_p * Cout_p * 4)                  # f32 matmul result temp
        return int(b * 1.3)                            # compiler-temp headroom

    # Keep >= 2 grid steps when B >= 2 so the "parallel" batch axis can be
    # sharded across v7x's two TensorCores.
    bb_cap = 1 if B <= 1 else max(1, B // 2)
    BB = 1
    for d in range(bb_cap, 0, -1):
        if B % d == 0 and est_bytes(d) <= int(0.45 * vmem_cap):
            BB = d
            break

    grid = (B // BB,)
    vmem_limit = min(max(2 * est_bytes(BB), 32 << 20), int(0.875 * vmem_cap))

    kernel = functools.partial(_wgcn_kernel, bb=BB, n_pad=N_p, reorder=reorder)

    def run(single_buffer_invariants):
        def inv_spec(shape):
            if single_buffer_invariants:
                return pl.BlockSpec(shape, lambda i: (0, 0),
                                    pipeline_mode=pl.Buffered(1))
            return pl.BlockSpec(shape, lambda i: (0, 0))

        return pl.pallas_call(
            kernel,
            out_shape=jax.ShapeDtypeStruct((B * N_p, Cout_p), out_dtype),
            grid_spec=pltpu.PrefetchScalarGridSpec(
                num_scalar_prefetch=0,
                grid=grid,
                in_specs=[
                    pl.BlockSpec((BB * N_p, Cin_p), lambda i: (i, 0)),
                    inv_spec((Cin_p, Cout_p)),
                    inv_spec((N_p, N_p)),
                    inv_spec((N_p, Cout_p)),
                ],
                out_specs=pl.BlockSpec((BB * N_p, Cout_p), lambda i: (i, 0)),
                scratch_shapes=[pltpu.VMEM((BB * N_p, scr_cols), cdt)],
            ),
            compiler_params=pltpu.CompilerParams(
                dimension_semantics=("parallel",),
                vmem_limit_bytes=vmem_limit),
        )(x2, w_p, adj_p, cbias_p)

    try:
        out2 = run(invariant_single_buffer)
    except Exception:
        if not invariant_single_buffer:
            raise
        # Installed JAX rejects BlockSpec.pipeline_mode / Buffered(1): fall back
        # to default double-buffered invariants (constant index_maps still avoid
        # re-DMA between grid steps).
        out2 = run(False)

    out = out2.reshape(B, N_p, Cout_p)
    return out[:, :N, :Cout]


# ---------------------------------------------------------------------------
# Synthetic init + pure-JAX reference (mirrors DenseWGCN)
# ---------------------------------------------------------------------------
def init_params(key, N, in_channels, out_channels, init_adj_w=0.05):
    k_adj, k_w, k_lw, k_lb = jax.random.split(key, 4)

    # Binary adjacency [1, N, N] with forced self-loops (diag = 1).
    adj = (jax.random.uniform(k_adj, (1, N, N)) > 0.5).astype(jnp.float32)
    eye = jnp.eye(N, dtype=jnp.float32)[None]
    adj = adj * (1.0 - eye) + eye

    # adj_w = adj * clamp(init_w + (rand-0.5)*0.1, 0.01, 1.0); diag = 1.
    perturb = 0.1
    rnd = jax.random.uniform(k_w, (1, N, N))
    scale = jnp.clip(init_adj_w + (rnd - 0.5) * perturb, 0.01, 1.0)
    adj_w = adj * scale
    adj_w = adj_w * (1.0 - eye) + eye

    # nn.Linear(in_channels, out_channels): weight [out, in], bias [out].
    bound = 1.0 / jnp.sqrt(jnp.float32(in_channels))
    lin_w = jax.random.uniform(k_lw, (out_channels, in_channels),
                               minval=-bound, maxval=bound)
    lin_b = jax.random.uniform(k_lb, (out_channels,),
                               minval=-bound, maxval=bound)

    # Extra output bias (nn.Parameter zeros).
    bias = jnp.zeros((out_channels,), jnp.float32)
    return adj, adj_w, lin_w, lin_b, bias


def reference(x, adj, adj_w, lin_w, lin_b, bias):
    h = jnp.einsum("bni,oi->bno", x, lin_w) + lin_b
    out = jnp.matmul(adj_w * adj, h)
    return out + bias


if __name__ == "__main__":
    B, N, Cin, Cout = 2, 8, 16, 32
    key = jax.random.PRNGKey(0)
    k_x, k_p = jax.random.split(key)

    x = jax.random.normal(k_x, (B, N, Cin), dtype=jnp.float32)
    adj, adj_w, lin_w, lin_b, bias = init_params(k_p, N, Cin, Cout)
    ref = reference(x, adj, adj_w, lin_w, lin_b, bias)

    # f32 compute path (tight check), exercising both matmul orderings.
    out_a = jax.block_until_ready(
        dense_wgcn(x, lin_w, lin_b, adj, adj_w, bias,
                   compute_dtype=jnp.float32, reorder=False))
    out_b = jax.block_until_ready(
        dense_wgcn(x, lin_w, lin_b, adj, adj_w, bias,
                   compute_dtype=jnp.float32, reorder=True))
    assert out_a.shape == (B, N, Cout)
    assert jnp.allclose(out_a, ref, rtol=5e-3, atol=5e-3), "f32 path (no reorder) mismatch"
    assert jnp.allclose(out_b, ref, rtol=5e-3, atol=5e-3), "f32 path (reorder) mismatch"

    # Default bf16 MXU path (f32 accumulation); looser tolerance.
    out_c = jax.block_until_ready(dense_wgcn(x, lin_w, lin_b, adj, adj_w, bias))
    assert out_c.shape == (B, N, Cout)
    assert jnp.allclose(out_c, ref, rtol=5e-2, atol=5e-2), "bf16 path mismatch"

    print("KERNEL_OK")
</pallas_src>

<mosaic_0001>
module attributes {stable_mosaic.version = 11 : i64} {
  func.func @_wgcn_kernel(%arg0: i32, %arg1: memref<128x128xf32, #tpu.memory_space<vmem>>, %arg2: memref<128x128xf32, #tpu.memory_space<vmem>>, %arg3: memref<128x128xf32, #tpu.memory_space<vmem>>, %arg4: memref<128x128xf32, #tpu.memory_space<vmem>>, %arg5: memref<128x128xf32, #tpu.memory_space<vmem>>, %arg6: memref<128x128xf32, #tpu.memory_space<vmem>>) attributes {dimension_semantics = [#tpu.dimension_semantics<parallel>], iteration_bounds = array<i64: 2>, scalar_prefetch = 0 : i64, scratch_operands = 1 : i64, tpu.core_type = #tpu.core_type<tc>, window_params = [{transform_indices = @transform_0, window_bounds = array<i64: 128, 128>}, {pipeline_mode = #tpu.pipeline_mode<synchronous>, transform_indices = @transform_1, window_bounds = array<i64: 128, 128>}, {pipeline_mode = #tpu.pipeline_mode<synchronous>, transform_indices = @transform_2, window_bounds = array<i64: 128, 128>}, {pipeline_mode = #tpu.pipeline_mode<synchronous>, transform_indices = @transform_3, window_bounds = array<i64: 128, 128>}, {transform_indices = @transform_4, window_bounds = array<i64: 128, 128>}]} {
    %c0 = arith.constant 0 : index
    %c0_0 = arith.constant 0 : index
    %0 = vector.load %arg3[%c0, %c0_0] : memref<128x128xf32, #tpu.memory_space<vmem>>, vector<128x128xf32>
    %c0_1 = arith.constant 0 : index
    %c0_2 = arith.constant 0 : index
    %1 = vector.load %arg2[%c0_1, %c0_2] : memref<128x128xf32, #tpu.memory_space<vmem>>, vector<128x128xf32>
    %c0_3 = arith.constant 0 : index
    %c0_4 = arith.constant 0 : index
    %2 = vector.load %arg4[%c0_3, %c0_4] : memref<128x128xf32, #tpu.memory_space<vmem>>, vector<128x128xf32>
    %c0_5 = arith.constant 0 : index
    %c0_6 = arith.constant 0 : index
    %3 = vector.load %arg1[%c0_5, %c0_6] : memref<128x128xf32, #tpu.memory_space<vmem>>, vector<128x128xf32>
    %cst = arith.constant dense<0.000000e+00> : vector<128x128xf32>
    %4 = tpu.matmul %3, %1, %cst {dimension_numbers = #tpu.dot_dimension_numbers<[1], [0], [0], [1], [0, 0, 1, 1], [], []>} : vector<128x128xf32>, vector<128x128xf32>, vector<128x128xf32> -> vector<128x128xf32>
    %c0_7 = arith.constant 0 : index
    %c0_8 = arith.constant 0 : index
    %5 = vector.load %arg6[%c0_7, %c0_8] : memref<128x128xf32, #tpu.memory_space<vmem>>, vector<128x128xf32>
    tpu.vector_store %arg6[%c0_7, %c0_8], %4 {strides = array<i32>} : memref<128x128xf32, #tpu.memory_space<vmem>>, vector<128x128xf32>,
    %c0_i32 = arith.constant 0 : i32
    %c128_i32 = arith.constant 128 : i32
    %6 = arith.muli %c0_i32, %c128_i32 : i32
    %7 = tpu.assume_multiple %6, 128 : i32
    %8 = arith.index_cast %7 : i32 to index
    %c0_9 = arith.constant 0 : index
    %9 = vector.load %arg6[%8, %c0_9] : memref<128x128xf32, #tpu.memory_space<vmem>>, vector<128x128xf32>
    %cst_10 = arith.constant dense<0.000000e+00> : vector<128x128xf32>
    %10 = tpu.matmul %0, %9, %cst_10 {dimension_numbers = #tpu.dot_dimension_numbers<[1], [0], [0], [1], [0, 0, 1, 1], [], []>} : vector<128x128xf32>, vector<128x128xf32>, vector<128x128xf32> -> vector<128x128xf32>
    %11 = arith.addf %10, %2 : vector<128x128xf32>
    %12 = arith.index_cast %7 : i32 to index
    %c0_11 = arith.constant 0 : index
    %13 = vector.load %arg5[%12, %c0_11] : memref<128x128xf32, #tpu.memory_space<vmem>>, vector<128x128xf32>
    tpu.vector_store %arg5[%12, %c0_11], %11 {strides = array<i32>} : memref<128x128xf32, #tpu.memory_space<vmem>>, vector<128x128xf32>,
    %c1_i32 = arith.constant 1 : i32
    return
  }
  func.func @transform_0(%arg0: i32) -> (i32, i32) {
    %c0_i32 = arith.constant 0 : i32
    %c0_i32_0 = arith.constant 0 : i32
    return %arg0, %c0_i32 : i32, i32
  }
  func.func @transform_1(%arg0: i32) -> (i32, i32) {
    %c0_i32 = arith.constant 0 : i32
    %c0_i32_0 = arith.constant 0 : i32
    %c0_i32_1 = arith.constant 0 : i32
    return %c0_i32, %c0_i32_0 : i32, i32
  }
  func.func @transform_2(%arg0: i32) -> (i32, i32) {
    %c0_i32 = arith.constant 0 : i32
    %c0_i32_0 = arith.constant 0 : i32
    %c0_i32_1 = arith.constant 0 : i32
    return %c0_i32, %c0_i32_0 : i32, i32
  }
  func.func @transform_3(%arg0: i32) -> (i32, i32) {
    %c0_i32 = arith.constant 0 : i32
    %c0_i32_0 = arith.constant 0 : i32
    %c0_i32_1 = arith.constant 0 : i32
    return %c0_i32, %c0_i32_0 : i32, i32
  }
  func.func @transform_4(%arg0: i32) -> (i32, i32) {
    %c0_i32 = arith.constant 0 : i32
    %c0_i32_0 = arith.constant 0 : i32
    return %arg0, %c0_i32 : i32, i32
  }
}

module attributes {stable_mosaic.version = 11 : i64} {
  func.func @_wgcn_kernel(%arg0: i32, %arg1: memref<128x128xf32, #tpu.memory_space<vmem>>, %arg2: memref<128x128xf32, #tpu.memory_space<vmem>>, %arg3: memref<128x128xf32, #tpu.memory_space<vmem>>, %arg4: memref<128x128xf32, #tpu.memory_space<vmem>>, %arg5: memref<128x128xf32, #tpu.memory_space<vmem>>, %arg6: memref<128x128xf32, #tpu.memory_space<vmem>>) attributes {dimension_semantics = [#tpu.dimension_semantics<parallel>], iteration_bounds = array<i64: 2>, scalar_prefetch = 0 : i64, scratch_operands = 1 : i64, tpu.core_type = #tpu.core_type<tc>, window_params = [{transform_indices = @transform_0, window_bounds = array<i64: 128, 128>}, {pipeline_mode = #tpu.pipeline_mode<synchronous>, transform_indices = @transform_1, window_bounds = array<i64: 128, 128>}, {pipeline_mode = #tpu.pipeline_mode<synchronous>, transform_indices = @transform_2, window_bounds = array<i64: 128, 128>}, {pipeline_mode = #tpu.pipeline_mode<synchronous>, transform_indices = @transform_3, window_bounds = array<i64: 128, 128>}, {transform_indices = @transform_4, window_bounds = array<i64: 128, 128>}]} {
    %c0 = arith.constant 0 : index
    %c0_0 = arith.constant 0 : index
    %0 = vector.load %arg3[%c0, %c0_0] : memref<128x128xf32, #tpu.memory_space<vmem>>, vector<128x128xf32>
    %c0_1 = arith.constant 0 : index
    %c0_2 = arith.constant 0 : index
    %1 = vector.load %arg2[%c0_1, %c0_2] : memref<128x128xf32, #tpu.memory_space<vmem>>, vector<128x128xf32>
    %c0_3 = arith.constant 0 : index
    %c0_4 = arith.constant 0 : index
    %2 = vector.load %arg4[%c0_3, %c0_4] : memref<128x128xf32, #tpu.memory_space<vmem>>, vector<128x128xf32>
    %c0_5 = arith.constant 0 : index
    %c0_6 = arith.constant 0 : index
    %3 = vector.load %arg1[%c0_5, %c0_6] : memref<128x128xf32, #tpu.memory_space<vmem>>, vector<128x128xf32>
    %cst = arith.constant dense<0.000000e+00> : vector<128x128xf32>
    %4 = tpu.matmul %3, %1, %cst {dimension_numbers = #tpu.dot_dimension_numbers<[1], [0], [0], [1], [0, 0, 1, 1], [], []>} : vector<128x128xf32>, vector<128x128xf32>, vector<128x128xf32> -> vector<128x128xf32>
    %c0_7 = arith.constant 0 : index
    %c0_8 = arith.constant 0 : index
    %5 = vector.load %arg6[%c0_7, %c0_8] : memref<128x128xf32, #tpu.memory_space<vmem>>, vector<128x128xf32>
    tpu.vector_store %arg6[%c0_7, %c0_8], %4 {strides = array<i32>} : memref<128x128xf32, #tpu.memory_space<vmem>>, vector<128x128xf32>,
    %c0_i32 = arith.constant 0 : i32
    %c128_i32 = arith.constant 128 : i32
    %6 = arith.muli %c0_i32, %c128_i32 : i32
    %7 = tpu.assume_multiple %6, 128 : i32
    %8 = arith.index_cast %7 : i32 to index
    %c0_9 = arith.constant 0 : index
    %9 = vector.load %arg6[%8, %c0_9] : memref<128x128xf32, #tpu.memory_space<vmem>>, vector<128x128xf32>
    %cst_10 = arith.constant dense<0.000000e+00> : vector<128x128xf32>
    %10 = tpu.matmul %0, %9, %cst_10 {dimension_numbers = #tpu.dot_dimension_numbers<[1], [0], [0], [1], [0, 0, 1, 1], [], []>} : vector<128x128xf32>, vector<128x128xf32>, vector<128x128xf32> -> vector<128x128xf32>
    %11 = arith.addf %10, %2 : vector<128x128xf32>
    %12 = arith.index_cast %7 : i32 to index
    %c0_11 = arith.constant 0 : index
    %13 = vector.load %arg5[%12, %c0_11] : memref<128x128xf32, #tpu.memory_space<vmem>>, vector<128x128xf32>
    tpu.vector_store %arg5[%12, %c0_11], %11 {strides = array<i32>} : memref<128x128xf32, #tpu.memory_space<vmem>>, vector<128x128xf32>,
    %c1_i32 = arith.constant 1 : i32
    return
  }
  func.func @transform_0(%arg0: i32) -> (i32, i32) {
    %c0_i32 = arith.constant 0 : i32
    %c0_i32_0 = arith.constant 0 : i32
    return %arg0, %c0_i32 : i32, i32
  }
  func.func @transform_1(%arg0: i32) -> (i32, i32) {
    %c0_i32 = arith.constant 0 : i32
    %c0_i32_0 = arith.constant 0 : i32
    %c0_i32_1 = arith.constant 0 : i32
    return %c0_i32, %c0_i32_0 : i32, i32
  }
  func.func @transform_2(%arg0: i32) -> (i32, i32) {
    %c0_i32 = arith.constant 0 : i32
    %c0_i32_0 = arith.constant 0 : i32
    %c0_i32_1 = arith.constant 0 : i32
    return %c0_i32, %c0_i32_0 : i32, i32
  }
  func.func @transform_3(%arg0: i32) -> (i32, i32) {
    %c0_i32 = arith.constant 0 : i32
    %c0_i32_0 = arith.constant 0 : i32
    %c0_i32_1 = arith.constant 0 : i32
    return %c0_i32, %c0_i32_0 : i32, i32
  }
  func.func @transform_4(%arg0: i32) -> (i32, i32) {
    %c0_i32 = arith.constant 0 : i32
    %c0_i32_0 = arith.constant 0 : i32
    return %arg0, %c0_i32 : i32, i32
  }
}

</mosaic_0001>

<llo_original>
// kernel: tpu_custom_call.1
$region0: #{tpu_custom_call.1}
  #allocation0 [shape = 'u32[]', space=smem, size = 0x4, offset = 0x4, fixed_abs, tag = 'smem constant byte address 0x4 - core index']
  #allocation1 [shape = 'u32[144,128]{1,0:T(1,128)}', space=vmem, size = 0x12000, scoped, tag = 'internal scratch']
  #allocation2 [shape = 'f32[128,128]{1,0:T(8,128)}', space=vmem, size = 0x10000, scoped, tag = 'scratch operand']
  %s0 = inlined_call_operand.hbm [shape: f32[256,128], index: 0, kind: input, shape index: {}]
  %s1 = inlined_call_operand.hbm [shape: f32[128,128], index: 1, kind: input, shape index: {}]
  %s2 = inlined_call_operand.hbm [shape: f32[128,128], index: 2, kind: input, shape index: {}]
  %s3 = inlined_call_operand.hbm [shape: f32[128,128], index: 3, kind: input, shape index: {}]
  %s4 = inlined_call_operand.hbm [shape: f32[256,128], index: 4, kind: output, shape index: {}]
  %s5 = sld [smem:[#allocation0]]
  $region65: #{tpu_custom_call.1} parent=0
    _
  %s7 = ssub.s32 1, %s5
  %s8 = scalar_select 0, %s7, %s5
  $region1: #{tpu_custom_call.1} parent=0
    #allocation3 [shape = 'u8[131072]{0}', space=vmem, size = 0x20000, scoped, tag = 'input window, operand 0']
    #allocation4 [shape = 's32[2]{0}', space=sflag, size = 0x8, scoped, tag = 'scoped memory for tpu_custom_call.1']
    #allocation5 [shape = 's32[2]{0}', space=sflag, size = 0x8, scoped, tag = 'scoped memory for tpu_custom_call.1']
    #allocation6 [shape = 'u8[65536]{0}', space=vmem, size = 0x10000, scoped, tag = 'input window, operand 1, single buffered']
    #allocation7 [shape = 's32[1]{0}', space=sflag, size = 0x4, scoped, tag = 'scoped memory for tpu_custom_call.1']
    #allocation8 [shape = 'u8[65536]{0}', space=vmem, size = 0x10000, scoped, tag = 'input window, operand 2, single buffered']
    #allocation9 [shape = 'u8[65536]{0}', space=vmem, size = 0x10000, scoped, tag = 'input window, operand 3, single buffered']
    #allocation10 [shape = 's32[1]{0}', space=sflag, size = 0x4, scoped, tag = 'scoped memory for tpu_custom_call.1']
    #allocation11 [shape = 'u8[131072]{0}', space=vmem, size = 0x20000, scoped, tag = 'output window, operand 0']
    %9 = vsyncpa [#allocation4], 0
    %s10 = scalar_lea.sflag [#allocation4], 1
    %11 = vsyncpa %s10, 0
    %12 = vsyncpa [#allocation7], 0
    %13 = vsyncpa [#allocation10], 0
    %14 = vsyncpa [#allocation5], 0
    %s15 = scalar_lea.sflag [#allocation5], 1
    %16 = vsyncpa %s15, 0
    loop: start=0, step=1, limit=4
    $region2: #{tpu_custom_call.1} parent=1 // loop_pre_header
      _
    $region3: #{tpu_custom_call.1} parent=1 // loop_header
      %s18 = sphi 0, %s22
      %p19 = scmp.ge.s32.totalorder %s18, 4
      %s28 = sphi 0, %s30
      %s31 = sphi 0, %s28
      %s32 = sphi 0, %s31
      %s48 = sphi 0, %s32
      %s52 = sphi 0, %s52
      %s54 = sphi 0, %s52
      %s55 = sphi 0, %s54
      %s69 = sphi 0, %s55
      %s73 = sphi 0, %s73
      %s75 = sphi 0, %s73
      %s76 = sphi 0, %s75
      %s90 = sphi 0, %s76
      %s94 = sphi 0, %s94
      %s96 = sphi 0, %s94
      %s97 = sphi 0, %s96
      %s111 = sphi 0, %s97
      %s117 = sphi 0, %s119
      %s120 = sphi 0, %s117
      %s121 = sphi 0, %s120
      %s137 = sphi 0, %s121
    $region4: #{tpu_custom_call.1} parent=1 // loop_header_branch
      %21 = sbr.rel (%p19) target = $region8
    $region5: #{tpu_custom_call.1} parent=1 // loop_body
      %s23 = ssub.s32 %s18, 1
      %s24 = ssub.s32 %s18, 2
      %s25 = sadd.s32 %s18, 1
      %s26 = ssub.s32 %s18, %s25
      %p27 = scmp.eq.s32.totalorder %s26, 0
      %s29 = sadd.s32 %s28, 1
      %s30 = scalar_select %p27, %s28, %s29
      %p33 = pneg %p27
      %p34 = scmp.eq.s32.totalorder %s18, 1
      %p35 = por %p33, %p34
      %p36 = scmp.ne.s32.totalorder %s28, %s31
      %p37 = scmp.eq.s32.totalorder %s18, 0
      %p38 = por %p36, %p37
      %p39 = scmp.ne.s32.totalorder %s28, %s31
      %p40 = scmp.eq.s32.totalorder %s23, 1
      %p41 = por %p39, %p40
      %p42 = scmp.ne.s32.totalorder %s31, %s32
      %p43 = scmp.eq.s32.totalorder %s23, 0
      %p44 = por %p42, %p43
      %p45 = scmp.ne.s32.totalorder %s31, %s32
      %p46 = scmp.eq.s32.totalorder %s24, 1
      %p47 = por %p45, %p46
      %p49 = scmp.ne.s32.totalorder %s32, %s48
      %p50 = scmp.eq.s32.totalorder %s24, 0
      %p51 = por %p49, %p50
      %s53 = sadd.s32 %s52, 1
      %p56 = scmp.eq.s32.totalorder %s18, 1
      %p57 = scmp.ne.s32.totalorder %s52, %s54
      %p58 = scmp.eq.s32.totalorder %s18, 0
      %p59 = por %p57, %p58
      %p60 = scmp.ne.s32.totalorder %s52, %s54
      %p61 = scmp.eq.s32.totalorder %s23, 1
      %p62 = por %p60, %p61
      %p63 = scmp.ne.s32.totalorder %s54, %s55
      %p64 = scmp.eq.s32.totalorder %s23, 0
      %p65 = por %p63, %p64
      %p66 = scmp.ne.s32.totalorder %s54, %s55
      %p67 = scmp.eq.s32.totalorder %s24, 1
      %p68 = por %p66, %p67
      %p70 = scmp.ne.s32.totalorder %s55, %s69
      %p71 = scmp.eq.s32.totalorder %s24, 0
      %p72 = por %p70, %p71
      %s74 = sadd.s32 %s73, 1
      %p77 = scmp.eq.s32.totalorder %s18, 1
      %p78 = scmp.ne.s32.totalorder %s73, %s75
      %p79 = scmp.eq.s32.totalorder %s18, 0
      %p80 = por %p78, %p79
      %p81 = scmp.ne.s32.totalorder %s73, %s75
      %p82 = scmp.eq.s32.totalorder %s23, 1
      %p83 = por %p81, %p82
      %p84 = scmp.ne.s32.totalorder %s75, %s76
      %p85 = scmp.eq.s32.totalorder %s23, 0
      %p86 = por %p84, %p85
      %p87 = scmp.ne.s32.totalorder %s75, %s76
      %p88 = scmp.eq.s32.totalorder %s24, 1
      %p89 = por %p87, %p88
      %p91 = scmp.ne.s32.totalorder %s76, %s90
      %p92 = scmp.eq.s32.totalorder %s24, 0
      %p93 = por %p91, %p92
      %s95 = sadd.s32 %s94, 1
      %p98 = scmp.eq.s32.totalorder %s18, 1
      %p99 = scmp.ne.s32.totalorder %s94, %s96
      %p100 = scmp.eq.s32.totalorder %s18, 0
      %p101 = por %p99, %p100
      %p102 = scmp.ne.s32.totalorder %s94, %s96
      %p103 = scmp.eq.s32.totalorder %s23, 1
      %p104 = por %p102, %p103
      %p105 = scmp.ne.s32.totalorder %s96, %s97
      %p106 = scmp.eq.s32.totalorder %s23, 0
      %p107 = por %p105, %p106
      %p108 = scmp.ne.s32.totalorder %s96, %s97
      %p109 = scmp.eq.s32.totalorder %s24, 1
      %p110 = por %p108, %p109
      %p112 = scmp.ne.s32.totalorder %s97, %s111
      %p113 = scmp.eq.s32.totalorder %s24, 0
      %p114 = por %p112, %p113
      %s115 = ssub.s32 %s18, %s25
      %p116 = scmp.eq.s32.totalorder %s115, 0
      %s118 = sadd.s32 %s117, 1
      %s119 = scalar_select %p116, %s117, %s118
      %p122 = pneg %p116
      %p123 = scmp.eq.s32.totalorder %s18, 1
      %p124 = por %p122, %p123
      %p125 = scmp.ne.s32.totalorder %s117, %s120
      %p126 = scmp.eq.s32.totalorder %s18, 0
      %p127 = por %p125, %p126
      %p128 = scmp.ne.s32.totalorder %s117, %s120
      %p129 = scmp.eq.s32.totalorder %s23, 1
      %p130 = por %p128, %p129
      %p131 = scmp.ne.s32.totalorder %s120, %s121
      %p132 = scmp.eq.s32.totalorder %s23, 0
      %p133 = por %p131, %p132
      %p134 = scmp.ne.s32.totalorder %s120, %s121
      %p135 = scmp.eq.s32.totalorder %s24, 1
      %p136 = por %p134, %p135
      %p138 = scmp.ne.s32.totalorder %s121, %s137
      %p139 = scmp.eq.s32.totalorder %s24, 0
      %p140 = por %p138, %p139
      %p141 = scmp.le.s32.totalorder 1, %s18
      %p142 = scmp.lt.s32.totalorder %s18, 3
      %p143 = pnand %p141, %p142
      %p144 = pneg %p143
      // Predicated region
      $region9: #{tpu_custom_call.1} parent=5 // pred_check
        _
      $region10: #{tpu_custom_call.1} parent=5 // pred_check_branch
        %146 = sbr.rel (%p143) target = $region12
      $region11: #{tpu_custom_call.1} parent=5 // pred_region
        %s147 = ssub.s32 %s18, 1
        // Predicated region
        $region13: #{tpu_custom_call.1} parent=11 // pred_check
          %p148 = pneg %p65
        $region14: #{tpu_custom_call.1} parent=11 // pred_check_branch
          %150 = sbr.rel (%p148) target = $region16
        $region15: #{tpu_custom_call.1} parent=11 // pred_region
          %s152 = ssub.s32 2048, 2048
          %153 = vsyncadd [#allocation7], %s152
          %s154 = sshll.u32 [#allocation6], 4
          %s155 = int_to_ptr.vmem [resolvable:$true] %s154
          %160 = dma.hbm_to_vmem [thread:$0]  %s1, 2048, %s155, [#allocation7], 128, 128, 8
        $region16: #{tpu_custom_call.1} parent=11 // pred_fallthru
          _
        // Predicated region
        $region17: #{tpu_custom_call.1} parent=11 // pred_check
          %p161 = pneg %p86
        $region18: #{tpu_custom_call.1} parent=11 // pred_check_branch
          %163 = sbr.rel (%p161) target = $region20
        $region19: #{tpu_custom_call.1} parent=11 // pred_region
          %s165 = ssub.s32 2048, 2048
          %166 = vsyncadd [#allocation7], %s165
          %s167 = sshll.u32 [#allocation8], 4
          %s168 = int_to_ptr.vmem [resolvable:$true] %s167
          %173 = dma.hbm_to_vmem [thread:$0]  %s2, 2048, %s168, [#allocation7], 128, 128, 8
        $region20: #{tpu_custom_call.1} parent=11 // pred_fallthru
          _
        // Predicated region
        $region21: #{tpu_custom_call.1} parent=11 // pred_check
          %p174 = pneg %p107
        $region22: #{tpu_custom_call.1} parent=11 // pred_check_branch
          %176 = sbr.rel (%p174) target = $region24
        $region23: #{tpu_custom_call.1} parent=11 // pred_region
          %s178 = ssub.s32 2048, 2048
          %179 = vsyncadd [#allocation10], %s178
          %s180 = sshll.u32 [#allocation9], 4
          %s181 = int_to_ptr.vmem [resolvable:$true] %s180
          %186 = dma.hbm_to_vmem [thread:$0]  %s3, 2048, %s181, [#allocation10], 128, 128, 8
        $region24: #{tpu_custom_call.1} parent=11 // pred_fallthru
          _
      $region12: #{tpu_custom_call.1} parent=5 // pred_fallthru
        _
      %p187 = scmp.lt.s32.totalorder %s18, 2
      // Predicated region
      $region25: #{tpu_custom_call.1} parent=5 // pred_check
        %p188 = pneg %p187
      $region26: #{tpu_custom_call.1} parent=5 // pred_check_branch
        %190 = sbr.rel (%p188) target = $region28
      $region27: #{tpu_custom_call.1} parent=5 // pred_region
        // Predicated region
        $region29: #{tpu_custom_call.1} parent=27 // pred_check
          %p191 = pneg %p38
        $region30: #{tpu_custom_call.1} parent=27 // pred_check_branch
          %193 = sbr.rel (%p191) target = $region32
        $region31: #{tpu_custom_call.1} parent=27 // pred_region
          %s194 = sand.u32 %s28, 1
          %s195 = scalar_lea.sflag [#allocation4], %s194
          %s196 = sand.u32 %s28, 1
          %s197 = smul.addr %s196, 128
          %s198 = scalar_lea.vmem [#allocation3], %s197
          %s199 = smul.u32 16, %s18
          %s201 = ssub.s32 2048, 2048
          %202 = vsyncadd %s195, %s201
          %s203 = smul.addr %s199, 128
          %s204 = scalar_lea.hbm %s0, %s203
          %s205 = sshll.u32 %s198, 4
          %s206 = int_to_ptr.vmem [resolvable:$true] %s205
          %211 = dma.hbm_to_vmem [thread:$0]  %s204, 2048, %s206, %s195, 128, 128, 8
        $region32: #{tpu_custom_call.1} parent=27 // pred_fallthru
          _
      $region28: #{tpu_custom_call.1} parent=5 // pred_fallthru
        _
      %p212 = scmp.le.s32.totalorder 1, %s18
      %p213 = scmp.lt.s32.totalorder %s18, 3
      %p214 = pnand %p212, %p213
      %p215 = pneg %p214
      // Predicated region
      $region33: #{tpu_custom_call.1} parent=5 // pred_check
        _
      $region34: #{tpu_custom_call.1} parent=5 // pred_check_branch
        %217 = sbr.rel (%p214) target = $region36
      $region35: #{tpu_custom_call.1} parent=5 // pred_region
        %s218 = ssub.s32 %s18, 1
        %s219 = sand.u32 %s31, 1
        %s220 = scalar_lea.sflag [#allocation4], %s219
        %s221 = sand.u32 %s31, 1
        %s222 = smul.addr %s221, 128
        %s223 = scalar_lea.vmem [#allocation3], %s222
        // Predicated region
        $region37: #{tpu_custom_call.1} parent=35 // pred_check
          %p224 = pneg %p44
        $region38: #{tpu_custom_call.1} parent=35 // pred_check_branch
          %226 = sbr.rel (%p224) target = $region40
        $region39: #{tpu_custom_call.1} parent=35 // pred_region
          %227 = dma.done %s220, 2048
        $region40: #{tpu_custom_call.1} parent=35 // pred_fallthru
          _
        // Predicated region
        $region41: #{tpu_custom_call.1} parent=35 // pred_check
          %p228 = pneg %p65
        $region42: #{tpu_custom_call.1} parent=35 // pred_check_branch
          %230 = sbr.rel (%p228) target = $region44
        $region43: #{tpu_custom_call.1} parent=35 // pred_region
          %231 = dma.done [#allocation7], 2048
        $region44: #{tpu_custom_call.1} parent=35 // pred_fallthru
          _
        // Predicated region
        $region45: #{tpu_custom_call.1} parent=35 // pred_check
          %p232 = pneg %p86
        $region46: #{tpu_custom_call.1} parent=35 // pred_check_branch
          %234 = sbr.rel (%p232) target = $region48
        $region47: #{tpu_custom_call.1} parent=35 // pred_region
          %235 = dma.done [#allocation7], 2048
        $region48: #{tpu_custom_call.1} parent=35 // pred_fallthru
          _
        // Predicated region
        $region49: #{tpu_custom_call.1} parent=35 // pred_check
          %p236 = pneg %p107
        $region50: #{tpu_custom_call.1} parent=35 // pred_check_branch
          %238 = sbr.rel (%p236) target = $region52
        $region51: #{tpu_custom_call.1} parent=35 // pred_region
          %239 = dma.done [#allocation10], 2048
        $region52: #{tpu_custom_call.1} parent=35 // pred_fallthru
          _
        %s240 = sand.u32 %s31, 1
        %s241 = scalar_lea.sflag [#allocation4], %s240
        %s242 = sand.u32 %s31, 1
        %s243 = smul.addr %s242, 128
        %s244 = scalar_lea.vmem [#allocation3], %s243
        %p245 = pneg %p44
        %p246 = pneg %p41
        %p247 = pneg %p65
        %p248 = pneg %p62
        %p249 = pneg %p86
        %p250 = pneg %p83
        %p251 = pneg %p107
        %p252 = pneg %p104
        %p253 = pneg %p133
        %p254 = pneg %p130
        %s255 = sand.u32 %s120, 1
        %s256 = scalar_lea.sflag [#allocation5], %s255
        %s257 = sand.u32 %s120, 1
        %s258 = smul.addr %s257, 128
        %s259 = scalar_lea.vmem [#allocation11], %s258
        %s260 = smul.u32 16, %s23
        %s261 = smul.u32 16, %s23
        %v262 = vld [vmem:[#allocation8] sm:$0xff]
        %v263 = vld [vmem:[#allocation8 + $0x8] sm:$0xff]
        %v264 = vld [vmem:[#allocation8 + $0x10] sm:$0xff]
        %v265 = vld [vmem:[#allocation8 + $0x18] sm:$0xff]
        %v266 = vld [vmem:[#allocation8 + $0x20] sm:$0xff]
        %v267 = vld [vmem:[#allocation8 + $0x28] sm:$0xff]
        %v268 = vld [vmem:[#allocation8 + $0x30] sm:$0xff]
        %v269 = vld [vmem:[#allocation8 + $0x38] sm:$0xff]
        %v270 = vld [vmem:[#allocation8 + $0x40] sm:$0xff]
        %v271 = vld [vmem:[#allocation8 + $0x48] sm:$0xff]
        %v272 = vld [vmem:[#allocation8 + $0x50] sm:$0xff]
        %v273 = vld [vmem:[#allocation8 + $0x58] sm:$0xff]
        %v274 = vld [vmem:[#allocation8 + $0x60] sm:$0xff]
        %v275 = vld [vmem:[#allocation8 + $0x68] sm:$0xff]
        %v276 = vld [vmem:[#allocation8 + $0x70] sm:$0xff]
        %v277 = vld [vmem:[#allocation8 + $0x78] sm:$0xff]
        %v278 = vld [vmem:[#allocation6] sm:$0xff]
        %v279 = vld [vmem:[#allocation6 + $0x8] sm:$0xff]
        %v280 = vld [vmem:[#allocation6 + $0x10] sm:$0xff]
        %v281 = vld [vmem:[#allocation6 + $0x18] sm:$0xff]
        %v282 = vld [vmem:[#allocation6 + $0x20] sm:$0xff]
        %v283 = vld [vmem:[#allocation6 + $0x28] sm:$0xff]
        %v284 = vld [vmem:[#allocation6 + $0x30] sm:$0xff]
        %v285 = vld [vmem:[#allocation6 + $0x38] sm:$0xff]
        %v286 = vld [vmem:[#allocation6 + $0x40] sm:$0xff]
        %v287 = vld [vmem:[#allocation6 + $0x48] sm:$0xff]
        %v288 = vld [vmem:[#allocation6 + $0x50] sm:$0xff]
        %v289 = vld [vmem:[#allocation6 + $0x58] sm:$0xff]
        %v290 = vld [vmem:[#allocation6 + $0x60] sm:$0xff]
        %v291 = vld [vmem:[#allocation6 + $0x68] sm:$0xff]
        %v292 = vld [vmem:[#allocation6 + $0x70] sm:$0xff]
        %v293 = vld [vmem:[#allocation6 + $0x78] sm:$0xff]
        %v294 = vld [vmem:[#allocation9] sm:$0xff]
        %v295 = vld [vmem:[#allocation9 + $0x8] sm:$0xff]
        %v296 = vld [vmem:[#allocation9 + $0x10] sm:$0xff]
        %v297 = vld [vmem:[#allocation9 + $0x18] sm:$0xff]
        %v298 = vld [vmem:[#allocation9 + $0x20] sm:$0xff]
        %v299 = vld [vmem:[#allocation9 + $0x28] sm:$0xff]
        %v300 = vld [vmem:[#allocation9 + $0x30] sm:$0xff]
        %v301 = vld [vmem:[#allocation9 + $0x38] sm:$0xff]
        %v302 = vld [vmem:[#allocation9 + $0x40] sm:$0xff]
        %v303 = vld [vmem:[#allocation9 + $0x48] sm:$0xff]
        %v304 = vld [vmem:[#allocation9 + $0x50] sm:$0xff]
        %v305 = vld [vmem:[#allocation9 + $0x58] sm:$0xff]
        %v306 = vld [vmem:[#allocation9 + $0x60] sm:$0xff]
        %v307 = vld [vmem:[#allocation9 + $0x68] sm:$0xff]
        %v308 = vld [vmem:[#allocation9 + $0x70] sm:$0xff]
        %v309 = vld [vmem:[#allocation9 + $0x78] sm:$0xff]
        %v310 = vld [vmem:[%s223] sm:$0xff]
        %v311 = vld [vmem:[%s223 + $0x8] sm:$0xff]
        %v312 = vld [vmem:[%s223 + $0x10] sm:$0xff]
        %v313 = vld [vmem:[%s223 + $0x18] sm:$0xff]
        %v314 = vld [vmem:[%s223 + $0x20] sm:$0xff]
        %v315 = vld [vmem:[%s223 + $0x28] sm:$0xff]
        %v316 = vld [vmem:[%s223 + $0x30] sm:$0xff]
        %v317 = vld [vmem:[%s223 + $0x38] sm:$0xff]
        %v318 = vld [vmem:[%s223 + $0x40] sm:$0xff]
        %v319 = vld [vmem:[%s223 + $0x48] sm:$0xff]
        %v320 = vld [vmem:[%s223 + $0x50] sm:$0xff]
        %v321 = vld [vmem:[%s223 + $0x58] sm:$0xff]
        %v322 = vld [vmem:[%s223 + $0x60] sm:$0xff]
        %v323 = vld [vmem:[%s223 + $0x68] sm:$0xff]
        %v324 = vld [vmem:[%s223 + $0x70] sm:$0xff]
        %v325 = vld [vmem:[%s223 + $0x78] sm:$0xff]
        %326 = vmatprep.subr.mxu0 0.0
        %327 = vmatpush1.msra.mxu0 %v278
        %328 = vmatprep.subr.mxu0 0.0
        %329 = vmatpush1.msra.mxu0 %v279
        %330 = vmatprep.subr.mxu0 0.0
        %331 = vmatpush1.msra.mxu0 %v280
        %332 = vmatprep.subr.mxu0 0.0
        %333 = vmatpush1.msra.mxu0 %v281
        %334 = vmatprep.subr.mxu0 0.0
        %335 = vmatpush1.msra.mxu0 %v282
        %336 = vmatprep.subr.mxu0 0.0
        %337 = vmatpush1.msra.mxu0 %v283
        %338 = vmatprep.subr.mxu0 0.0
        %339 = vmatpush1.msra.mxu0 %v284
        %340 = vmatprep.subr.mxu0 0.0
        %341 = vmatpush1.msra.mxu0 %v285
        %342 = vmatprep.subr.mxu0 0.0
        %343 = vmatpush1.msra.mxu0 %v286
        %344 = vmatprep.subr.mxu0 0.0
        %345 = vmatpush1.msra.mxu0 %v287
        %346 = vmatprep.subr.mxu0 0.0
        %347 = vmatpush1.msra.mxu0 %v288
        %348 = vmatprep.subr.mxu0 0.0
        %349 = vmatpush1.msra.mxu0 %v289
        %350 = vmatprep.subr.mxu0 0.0
        %351 = vmatpush1.msra.mxu0 %v290
        %352 = vmatprep.subr.mxu0 0.0
        %353 = vmatpush1.msra.mxu0 %v291
        %354 = vmatprep.subr.mxu0 0.0
        %355 = vmatpush1.msra.mxu0 %v292
        %356 = vmatprep.subr.mxu0 0.0
        %357 = vmatpush1.msra.mxu0 %v293
        %358 = vmatprep.subr.mxu0 0.0
        %359 = vmatpush1.msra.mxu0 0.0
        %360 = vmatprep.subr.mxu0 0.0
        %361 = vmatpush1.msra.mxu0 0.0
        %362 = vmatprep.subr.mxu0 0.0
        %363 = vmatpush1.msra.mxu0 0.0
        %364 = vmatprep.subr.mxu0 0.0
        %365 = vmatpush1.msra.mxu0 0.0
        %366 = vmatprep.subr.mxu0 0.0
        %367 = vmatpush1.msra.mxu0 0.0
        %368 = vmatprep.subr.mxu0 0.0
        %369 = vmatpush1.msra.mxu0 0.0
        %370 = vmatprep.subr.mxu0 0.0
        %371 = vmatpush1.msra.mxu0 0.0
        %372 = vmatprep.subr.mxu0 0.0
        %373 = vmatpush1.msra.mxu0 0.0
        %374 = vmatprep.subr.mxu0 0.0
        %375 = vmatpush1.msra.mxu0 0.0
        %376 = vmatprep.subr.mxu0 0.0
        %377 = vmatpush1.msra.mxu0 0.0
        %378 = vmatprep.subr.mxu0 0.0
        %379 = vmatpush1.msra.mxu0 0.0
        %380 = vmatprep.subr.mxu0 0.0
        %381 = vmatpush1.msra.mxu0 0.0
        %382 = vmatprep.subr.mxu0 0.0
        %383 = vmatpush1.msra.mxu0 0.0
        %384 = vmatprep.subr.mxu0 0.0
        %385 = vmatpush1.msra.mxu0 0.0
        %386 = vmatprep.subr.mxu0 0.0
        %387 = vmatpush1.msra.mxu0 0.0
        %388 = vmatprep.subr.mxu0 0.0
        %389 = vmatpush1.msra.mxu0 0.0
        %390 = vmatprep.mubr.f32.mxu0 0.0
        %391 = vmatmul.mubr.f32.gmra.mrb[0].mxu0 %v310
        %v392 = vpop.f32.mrb[0].mxu0
        %v393 = vadd.f32 0.0, %v392
        %v394 = vpop.f32.mrb[0].mxu0
        %395 = vmatprep.mubr.f32.mxu0 0.0
        %396 = vmatmul.mubr.f32.gmra.mrb[0].mxu0 %v311
        %v397 = vpop.f32.mrb[0].mxu0
        %v398 = vadd.f32 0.0, %v397
        %v399 = vpop.f32.mrb[0].mxu0
        %400 = vmatprep.mubr.f32.mxu0 0.0
        %401 = vmatmul.mubr.f32.gmra.mrb[0].mxu0 %v312
        %v402 = vpop.f32.mrb[0].mxu0
        %v403 = vadd.f32 0.0, %v402
        %v404 = vpop.f32.mrb[0].mxu0
        %405 = vmatprep.mubr.f32.mxu0 0.0
        %406 = vmatmul.mubr.f32.gmra.mrb[0].mxu0 %v313
        %v407 = vpop.f32.mrb[0].mxu0
        %v408 = vadd.f32 0.0, %v407
        %v409 = vpop.f32.mrb[0].mxu0
        %410 = vmatprep.mubr.f32.mxu0 0.0
        %411 = vmatmul.mubr.f32.gmra.mrb[0].mxu0 %v314
        %v412 = vpop.f32.mrb[0].mxu0
        %v413 = vadd.f32 0.0, %v412
        %v414 = vpop.f32.mrb[0].mxu0
        %415 = vmatprep.mubr.f32.mxu0 0.0
        %416 = vmatmul.mubr.f32.gmra.mrb[0].mxu0 %v315
        %v417 = vpop.f32.mrb[0].mxu0
        %v418 = vadd.f32 0.0, %v417
        %v419 = vpop.f32.mrb[0].mxu0
        %420 = vmatprep.mubr.f32.mxu0 0.0
        %421 = vmatmul.mubr.f32.gmra.mrb[0].mxu0 %v316
        %v422 = vpop.f32.mrb[0].mxu0
        %v423 = vadd.f32 0.0, %v422
        %v424 = vpop.f32.mrb[0].mxu0
        %425 = vmatprep.mubr.f32.mxu0 0.0
        %426 = vmatmul.mubr.f32.gmra.mrb[0].mxu0 %v317
        %v427 = vpop.f32.mrb[0].mxu0
        %v428 = vadd.f32 0.0, %v427
        %v429 = vpop.f32.mrb[0].mxu0
        %430 = vmatprep.mubr.f32.mxu0 0.0
        %431 = vmatmul.mubr.f32.gmra.mrb[0].mxu0 %v318
        %v432 = vpop.f32.mrb[0].mxu0
        %v433 = vadd.f32 0.0, %v432
        %v434 = vpop.f32.mrb[0].mxu0
        %435 = vmatprep.mubr.f32.mxu0 0.0
        %436 = vmatmul.mubr.f32.gmra.mrb[0].mxu0 %v319
        %v437 = vpop.f32.mrb[0].mxu0
        %v438 = vadd.f32 0.0, %v437
        %v439 = vpop.f32.mrb[0].mxu0
        %440 = vmatprep.mubr.f32.mxu0 0.0
        %441 = vmatmul.mubr.f32.gmra.mrb[0].mxu0 %v320
        %v442 = vpop.f32.mrb[0].mxu0
        %v443 = vadd.f32 0.0, %v442
        %v444 = vpop.f32.mrb[0].mxu0
        %445 = vmatprep.mubr.f32.mxu0 0.0
        %446 = vmatmul.mubr.f32.gmra.mrb[0].mxu0 %v321
        %v447 = vpop.f32.mrb[0].mxu0
        %v448 = vadd.f32 0.0, %v447
        %v449 = vpop.f32.mrb[0].mxu0
        %450 = vmatprep.mubr.f32.mxu0 0.0
        %451 = vmatmul.mubr.f32.gmra.mrb[0].mxu0 %v322
        %v452 = vpop.f32.mrb[0].mxu0
        %v453 = vadd.f32 0.0, %v452
        %v454 = vpop.f32.mrb[0].mxu0
        %455 = vmatprep.mubr.f32.mxu0 0.0
        %456 = vmatmul.mubr.f32.gmra.mrb[0].mxu0 %v323
        %v457 = vpop.f32.mrb[0].mxu0
        %v458 = vadd.f32 0.0, %v457
        %v459 = vpop.f32.mrb[0].mxu0
        %460 = vmatprep.mubr.f32.mxu0 0.0
        %461 = vmatmul.mubr.f32.gmra.mrb[0].mxu0 %v324
        %v462 = vpop.f32.mrb[0].mxu0
        %v463 = vadd.f32 0.0, %v462
        %v464 = vpop.f32.mrb[0].mxu0
        %465 = vmatprep.mubr.f32.mxu0 0.0
        %466 = vmatmul.mubr.f32.gmra.mrb[0].mxu0 %v325
        %v467 = vpop.f32.mrb[0].mxu0
        %v468 = vadd.f32 0.0, %v467
        %v469 = vpop.f32.mrb[0].mxu0
        %470 = vdwg.mxu0
        %471 = vst [vmem:[#allocation2] sm:$0xff] %v393
        %472 = vst [vmem:[#allocation2 + $0x8] sm:$0xff] %v398
        %473 = vst [vmem:[#allocation2 + $0x10] sm:$0xff] %v403
        %474 = vst [vmem:[#allocation2 + $0x18] sm:$0xff] %v408
        %475 = vst [vmem:[#allocation2 + $0x20] sm:$0xff] %v413
        %476 = vst [vmem:[#allocation2 + $0x28] sm:$0xff] %v418
        %477 = vst [vmem:[#allocation2 + $0x30] sm:$0xff] %v423
        %478 = vst [vmem:[#allocation2 + $0x38] sm:$0xff] %v428
        %479 = vst [vmem:[#allocation2 + $0x40] sm:$0xff] %v433
        %480 = vst [vmem:[#allocation2 + $0x48] sm:$0xff] %v438
        %481 = vst [vmem:[#allocation2 + $0x50] sm:$0xff] %v443
        %482 = vst [vmem:[#allocation2 + $0x58] sm:$0xff] %v448
        %483 = vst [vmem:[#allocation2 + $0x60] sm:$0xff] %v453
        %484 = vst [vmem:[#allocation2 + $0x68] sm:$0xff] %v458
        %485 = vst [vmem:[#allocation2 + $0x70] sm:$0xff] %v463
        %486 = vst [vmem:[#allocation2 + $0x78] sm:$0xff] %v468
        %v487 = vld [vmem:[#allocation2] sm:$0xff]
        %v488 = vld [vmem:[#allocation2 + $0x8] sm:$0xff]
        %v489 = vld [vmem:[#allocation2 + $0x10] sm:$0xff]
        %v490 = vld [vmem:[#allocation2 + $0x18] sm:$0xff]
        %v491 = vld [vmem:[#allocation2 + $0x20] sm:$0xff]
        %v492 = vld [vmem:[#allocation2 + $0x28] sm:$0xff]
        %v493 = vld [vmem:[#allocation2 + $0x30] sm:$0xff]
        %v494 = vld [vmem:[#allocation2 + $0x38] sm:$0xff]
        %v495 = vld [vmem:[#allocation2 + $0x40] sm:$0xff]
        %v496 = vld [vmem:[#allocation2 + $0x48] sm:$0xff]
        %v497 = vld [vmem:[#allocation2 + $0x50] sm:$0xff]
        %v498 = vld [vmem:[#allocation2 + $0x58] sm:$0xff]
        %v499 = vld [vmem:[#allocation2 + $0x60] sm:$0xff]
        %v500 = vld [vmem:[#allocation2 + $0x68] sm:$0xff]
        %v501 = vld [vmem:[#allocation2 + $0x70] sm:$0xff]
        %v502 = vld [vmem:[#allocation2 + $0x78] sm:$0xff]
        %503 = vmatprep.subr.mxu0 0.0
        %504 = vmatpush1.msra.mxu0 %v487
        %505 = vmatprep.subr.mxu0 0.0
        %506 = vmatpush1.msra.mxu0 %v488
        %507 = vmatprep.subr.mxu0 0.0
        %508 = vmatpush1.msra.mxu0 %v489
        %509 = vmatprep.subr.mxu0 0.0
        %510 = vmatpush1.msra.mxu0 %v490
        %511 = vmatprep.subr.mxu0 0.0
        %512 = vmatpush1.msra.mxu0 %v491
        %513 = vmatprep.subr.mxu0 0.0
        %514 = vmatpush1.msra.mxu0 %v492
        %515 = vmatprep.subr.mxu0 0.0
        %516 = vmatpush1.msra.mxu0 %v493
        %517 = vmatprep.subr.mxu0 0.0
        %518 = vmatpush1.msra.mxu0 %v494
        %519 = vmatprep.subr.mxu0 0.0
        %520 = vmatpush1.msra.mxu0 %v495
        %521 = vmatprep.subr.mxu0 0.0
        %522 = vmatpush1.msra.mxu0 %v496
        %523 = vmatprep.subr.mxu0 0.0
        %524 = vmatpush1.msra.mxu0 %v497
        %525 = vmatprep.subr.mxu0 0.0
        %526 = vmatpush1.msra.mxu0 %v498
        %527 = vmatprep.subr.mxu0 0.0
        %528 = vmatpush1.msra.mxu0 %v499
        %529 = vmatprep.subr.mxu0 0.0
        %530 = vmatpush1.msra.mxu0 %v500
        %531 = vmatprep.subr.mxu0 0.0
        %532 = vmatpush1.msra.mxu0 %v501
        %533 = vmatprep.subr.mxu0 0.0
        %534 = vmatpush1.msra.mxu0 %v502
        %535 = vmatprep.subr.mxu0 0.0
        %536 = vmatpush1.msra.mxu0 0.0
        %537 = vmatprep.subr.mxu0 0.0
        %538 = vmatpush1.msra.mxu0 0.0
        %539 = vmatprep.subr.mxu0 0.0
        %540 = vmatpush1.msra.mxu0 0.0
        %541 = vmatprep.subr.mxu0 0.0
        %542 = vmatpush1.msra.mxu0 0.0
        %543 = vmatprep.subr.mxu0 0.0
        %544 = vmatpush1.msra.mxu0 0.0
        %545 = vmatprep.subr.mxu0 0.0
        %546 = vmatpush1.msra.mxu0 0.0
        %547 = vmatprep.subr.mxu0 0.0
        %548 = vmatpush1.msra.mxu0 0.0
        %549 = vmatprep.subr.mxu0 0.0
        %550 = vmatpush1.msra.mxu0 0.0
        %551 = vmatprep.subr.mxu0 0.0
        %552 = vmatpush1.msra.mxu0 0.0
        %553 = vmatprep.subr.mxu0 0.0
        %554 = vmatpush1.msra.mxu0 0.0
        %555 = vmatprep.subr.mxu0 0.0
        %556 = vmatpush1.msra.mxu0 0.0
        %557 = vmatprep.subr.mxu0 0.0
        %558 = vmatpush1.msra.mxu0 0.0
        %559 = vmatprep.subr.mxu0 0.0
        %560 = vmatpush1.msra.mxu0 0.0
        %561 = vmatprep.subr.mxu0 0.0
        %562 = vmatpush1.msra.mxu0 0.0
        %563 = vmatprep.subr.mxu0 0.0
        %564 = vmatpush1.msra.mxu0 0.0
        %565 = vmatprep.subr.mxu0 0.0
        %566 = vmatpush1.msra.mxu0 0.0
        %567 = vmatprep.mubr.f32.mxu0 0.0
        %568 = vmatmul.mubr.f32.gmra.mrb[0].mxu0 %v262
        %v569 = vpop.f32.mrb[0].mxu0
        %v570 = vadd.f32 %v294, %v569
        %v571 = vpop.f32.mrb[0].mxu0
        %572 = vmatprep.mubr.f32.mxu0 0.0
        %573 = vmatmul.mubr.f32.gmra.mrb[0].mxu0 %v263
        %v574 = vpop.f32.mrb[0].mxu0
        %v575 = vadd.f32 %v295, %v574
        %v576 = vpop.f32.mrb[0].mxu0
        %577 = vmatprep.mubr.f32.mxu0 0.0
        %578 = vmatmul.mubr.f32.gmra.mrb[0].mxu0 %v264
        %v579 = vpop.f32.mrb[0].mxu0
        %v580 = vadd.f32 %v296, %v579
        %v581 = vpop.f32.mrb[0].mxu0
        %582 = vmatprep.mubr.f32.mxu0 0.0
        %583 = vmatmul.mubr.f32.gmra.mrb[0].mxu0 %v265
        %v584 = vpop.f32.mrb[0].mxu0
        %v585 = vadd.f32 %v297, %v584
        %v586 = vpop.f32.mrb[0].mxu0
        %587 = vmatprep.mubr.f32.mxu0 0.0
        %588 = vmatmul.mubr.f32.gmra.mrb[0].mxu0 %v266
        %v589 = vpop.f32.mrb[0].mxu0
        %v590 = vadd.f32 %v298, %v589
        %v591 = vpop.f32.mrb[0].mxu0
        %592 = vmatprep.mubr.f32.mxu0 0.0
        %593 = vmatmul.mubr.f32.gmra.mrb[0].mxu0 %v267
        %v594 = vpop.f32.mrb[0].mxu0
        %v595 = vadd.f32 %v299, %v594
        %v596 = vpop.f32.mrb[0].mxu0
        %597 = vmatprep.mubr.f32.mxu0 0.0
        %598 = vmatmul.mubr.f32.gmra.mrb[0].mxu0 %v268
        %v599 = vpop.f32.mrb[0].mxu0
        %v600 = vadd.f32 %v300, %v599
        %v601 = vpop.f32.mrb[0].mxu0
        %602 = vmatprep.mubr.f32.mxu0 0.0
        %603 = vmatmul.mubr.f32.gmra.mrb[0].mxu0 %v269
        %v604 = vpop.f32.mrb[0].mxu0
        %v605 = vadd.f32 %v301, %v604
        %v606 = vpop.f32.mrb[0].mxu0
        %607 = vmatprep.mubr.f32.mxu0 0.0
        %608 = vmatmul.mubr.f32.gmra.mrb[0].mxu0 %v270
        %v609 = vpop.f32.mrb[0].mxu0
        %v610 = vadd.f32 %v302, %v609
        %v611 = vpop.f32.mrb[0].mxu0
        %612 = vmatprep.mubr.f32.mxu0 0.0
        %613 = vmatmul.mubr.f32.gmra.mrb[0].mxu0 %v271
        %v614 = vpop.f32.mrb[0].mxu0
        %v615 = vadd.f32 %v303, %v614
        %v616 = vpop.f32.mrb[0].mxu0
        %617 = vmatprep.mubr.f32.mxu0 0.0
        %618 = vmatmul.mubr.f32.gmra.mrb[0].mxu0 %v272
        %v619 = vpop.f32.mrb[0].mxu0
        %v620 = vadd.f32 %v304, %v619
        %v621 = vpop.f32.mrb[0].mxu0
        %622 = vmatprep.mubr.f32.mxu0 0.0
        %623 = vmatmul.mubr.f32.gmra.mrb[0].mxu0 %v273
        %v624 = vpop.f32.mrb[0].mxu0
        %v625 = vadd.f32 %v305, %v624
        %v626 = vpop.f32.mrb[0].mxu0
        %627 = vmatprep.mubr.f32.mxu0 0.0
        %628 = vmatmul.mubr.f32.gmra.mrb[0].mxu0 %v274
        %v629 = vpop.f32.mrb[0].mxu0
        %v630 = vadd.f32 %v306, %v629
        %v631 = vpop.f32.mrb[0].mxu0
        %632 = vmatprep.mubr.f32.mxu0 0.0
        %633 = vmatmul.mubr.f32.gmra.mrb[0].mxu0 %v275
        %v634 = vpop.f32.mrb[0].mxu0
        %v635 = vadd.f32 %v307, %v634
        %v636 = vpop.f32.mrb[0].mxu0
        %637 = vmatprep.mubr.f32.mxu0 0.0
        %638 = vmatmul.mubr.f32.gmra.mrb[0].mxu0 %v276
        %v639 = vpop.f32.mrb[0].mxu0
        %v640 = vadd.f32 %v308, %v639
        %v641 = vpop.f32.mrb[0].mxu0
        %642 = vmatprep.mubr.f32.mxu0 0.0
        %643 = vmatmul.mubr.f32.gmra.mrb[0].mxu0 %v277
        %v644 = vpop.f32.mrb[0].mxu0
        %v645 = vadd.f32 %v309, %v644
        %v646 = vpop.f32.mrb[0].mxu0
        %647 = vdwg.mxu0
        %648 = vst [vmem:[%s259] sm:$0xff] %v570
        %649 = vst [vmem:[%s259 + $0x8] sm:$0xff] %v575
        %650 = vst [vmem:[%s259 + $0x10] sm:$0xff] %v580
        %651 = vst [vmem:[%s259 + $0x18] sm:$0xff] %v585
        %652 = vst [vmem:[%s259 + $0x20] sm:$0xff] %v590
        %653 = vst [vmem:[%s259 + $0x28] sm:$0xff] %v595
        %654 = vst [vmem:[%s259 + $0x30] sm:$0xff] %v600
        %655 = vst [vmem:[%s259 + $0x38] sm:$0xff] %v605
        %656 = vst [vmem:[%s259 + $0x40] sm:$0xff] %v610
        %657 = vst [vmem:[%s259 + $0x48] sm:$0xff] %v615
        %658 = vst [vmem:[%s259 + $0x50] sm:$0xff] %v620
        %659 = vst [vmem:[%s259 + $0x58] sm:$0xff] %v625
        %660 = vst [vmem:[%s259 + $0x60] sm:$0xff] %v630
        %661 = vst [vmem:[%s259 + $0x68] sm:$0xff] %v635
        %662 = vst [vmem:[%s259 + $0x70] sm:$0xff] %v640
        %663 = vst [vmem:[%s259 + $0x78] sm:$0xff] %v645
        %s664 = sand.u32 %s120, 1
        %s665 = scalar_lea.sflag [#allocation5], %s664
        %s666 = sand.u32 %s120, 1
        %s667 = smul.addr %s666, 128
        %s668 = scalar_lea.vmem [#allocation11], %s667
        // Predicated region
        $region53: #{tpu_custom_call.1} parent=35 // pred_check
          %p669 = pneg %p130
        $region54: #{tpu_custom_call.1} parent=35 // pred_check_branch
          %671 = sbr.rel (%p669) target = $region56
        $region55: #{tpu_custom_call.1} parent=35 // pred_region
          %s672 = smul.u32 16, %s23
          %s674 = ssub.s32 2048, 2048
          %675 = vsyncadd %s665, %s674
          %s676 = smul.addr %s672, 128
          %s677 = scalar_lea.hbm %s4, %s676
          %s678 = sshll.u32 %s668, 4
          %s679 = int_to_ptr.vmem [resolvable:$true] %s678
          %684 = dma.vmem_to_hbm [thread:$0]  %s679, 2048, %s677, %s665, 128, 128, 8
        $region56: #{tpu_custom_call.1} parent=35 // pred_fallthru
          _
      $region36: #{tpu_custom_call.1} parent=5 // pred_fallthru
        _
      %p685 = scmp.le.s32.totalorder 2, %s18
      // Predicated region
      $region57: #{tpu_custom_call.1} parent=5 // pred_check
        %p686 = pneg %p685
      $region58: #{tpu_custom_call.1} parent=5 // pred_check_branch
        %688 = sbr.rel (%p686) target = $region60
      $region59: #{tpu_custom_call.1} parent=5 // pred_region
        %s689 = ssub.s32 %s18, 2
        // Predicated region
        $region61: #{tpu_custom_call.1} parent=59 // pred_check
          %p690 = pneg %p136
        $region62: #{tpu_custom_call.1} parent=59 // pred_check_branch
          %692 = sbr.rel (%p690) target = $region64
        $region63: #{tpu_custom_call.1} parent=59 // pred_region
          %s693 = sand.u32 %s121, 1
          %s694 = scalar_lea.sflag [#allocation5], %s693
          %s695 = sand.u32 %s121, 1
          %s696 = smul.addr %s695, 128
          %s697 = scalar_lea.vmem [#allocation11], %s696
          %698 = dma.done %s694, 2048
        $region64: #{tpu_custom_call.1} parent=59 // pred_fallthru
          _
      $region60: #{tpu_custom_call.1} parent=5 // pred_fallthru
        _
    $region6: #{tpu_custom_call.1} parent=1 // loop_footer
      %s22 = sadd.s32 1, %s18
    $region7: #{tpu_custom_call.1} parent=1 // loop_footer_branch
      %17 = sbr.rel target = $region3
    $region8: #{tpu_custom_call.1} parent=1 // loop_exit
      _
    %699 = vsyncpa [#allocation4], 1
    %s700 = scalar_lea.sflag [#allocation4], 1
    %701 = vsyncpa %s700, 1
    %702 = vsyncpa [#allocation7], 1
    %703 = vsyncpa [#allocation10], 1
    %704 = vsyncpa [#allocation5], 1
    %s705 = scalar_lea.sflag [#allocation5], 1
    %706 = vsyncpa %s705, 1

// kernel: tpu_custom_call.1
$region0: #{tpu_custom_call.1}
  #allocation0 [shape = 'u32[]', space=smem, size = 0x4, offset = 0x4, fixed_abs, tag = 'smem constant byte address 0x4 - core index']
  #allocation1 [shape = 'u32[144,128]{1,0:T(1,128)}', space=vmem, size = 0x12000, scoped, tag = 'internal scratch']
  #allocation2 [shape = 'f32[128,128]{1,0:T(8,128)}', space=vmem, size = 0x10000, scoped, tag = 'scratch operand']
  %s0 = inlined_call_operand.hbm [shape: f32[256,128], index: 0, kind: input, shape index: {}]
  %s1 = inlined_call_operand.hbm [shape: f32[128,128], index: 1, kind: input, shape index: {}]
  %s2 = inlined_call_operand.hbm [shape: f32[128,128], index: 2, kind: input, shape index: {}]
  %s3 = inlined_call_operand.hbm [shape: f32[128,128], index: 3, kind: input, shape index: {}]
  %s4 = inlined_call_operand.hbm [shape: f32[256,128], index: 4, kind: output, shape index: {}]
  %s5 = sld [smem:[#allocation0]]
  $region65: #{tpu_custom_call.1} parent=0
    _
  %s7 = ssub.s32 1, %s5
  %s8 = scalar_select 0, %s7, %s5
  $region1: #{tpu_custom_call.1} parent=0
    #allocation3 [shape = 'u8[131072]{0}', space=vmem, size = 0x20000, scoped, tag = 'input window, operand 0']
    #allocation4 [shape = 's32[2]{0}', space=sflag, size = 0x8, scoped, tag = 'scoped memory for tpu_custom_call.1']
    #allocation5 [shape = 's32[2]{0}', space=sflag, size = 0x8, scoped, tag = 'scoped memory for tpu_custom_call.1']
    #allocation6 [shape = 'u8[65536]{0}', space=vmem, size = 0x10000, scoped, tag = 'input window, operand 1, single buffered']
    #allocation7 [shape = 's32[1]{0}', space=sflag, size = 0x4, scoped, tag = 'scoped memory for tpu_custom_call.1']
    #allocation8 [shape = 'u8[65536]{0}', space=vmem, size = 0x10000, scoped, tag = 'input window, operand 2, single buffered']
    #allocation9 [shape = 'u8[65536]{0}', space=vmem, size = 0x10000, scoped, tag = 'input window, operand 3, single buffered']
    #allocation10 [shape = 's32[1]{0}', space=sflag, size = 0x4, scoped, tag = 'scoped memory for tpu_custom_call.1']
    #allocation11 [shape = 'u8[131072]{0}', space=vmem, size = 0x20000, scoped, tag = 'output window, operand 0']
    %9 = vsyncpa [#allocation4], 0
    %s10 = scalar_lea.sflag [#allocation4], 1
    %11 = vsyncpa %s10, 0
    %12 = vsyncpa [#allocation7], 0
    %13 = vsyncpa [#allocation10], 0
    %14 = vsyncpa [#allocation5], 0
    %s15 = scalar_lea.sflag [#allocation5], 1
    %16 = vsyncpa %s15, 0
    loop: start=0, step=1, limit=4
    $region2: #{tpu_custom_call.1} parent=1 // loop_pre_header
      _
    $region3: #{tpu_custom_call.1} parent=1 // loop_header
      %s18 = sphi 0, %s22
      %p19 = scmp.ge.s32.totalorder %s18, 4
      %s28 = sphi 0, %s30
      %s31 = sphi 0, %s28
      %s32 = sphi 0, %s31
      %s48 = sphi 0, %s32
      %s52 = sphi 0, %s52
      %s54 = sphi 0, %s52
      %s55 = sphi 0, %s54
      %s69 = sphi 0, %s55
      %s73 = sphi 0, %s73
      %s75 = sphi 0, %s73
      %s76 = sphi 0, %s75
      %s90 = sphi 0, %s76
      %s94 = sphi 0, %s94
      %s96 = sphi 0, %s94
      %s97 = sphi 0, %s96
      %s111 = sphi 0, %s97
      %s117 = sphi 0, %s119
      %s120 = sphi 0, %s117
      %s121 = sphi 0, %s120
      %s137 = sphi 0, %s121
    $region4: #{tpu_custom_call.1} parent=1 // loop_header_branch
      %21 = sbr.rel (%p19) target = $region8
    $region5: #{tpu_custom_call.1} parent=1 // loop_body
      %s23 = ssub.s32 %s18, 1
      %s24 = ssub.s32 %s18, 2
      %s25 = sadd.s32 %s18, 1
      %s26 = ssub.s32 %s18, %s25
      %p27 = scmp.eq.s32.totalorder %s26, 0
      %s29 = sadd.s32 %s28, 1
      %s30 = scalar_select %p27, %s28, %s29
      %p33 = pneg %p27
      %p34 = scmp.eq.s32.totalorder %s18, 1
      %p35 = por %p33, %p34
      %p36 = scmp.ne.s32.totalorder %s28, %s31
      %p37 = scmp.eq.s32.totalorder %s18, 0
      %p38 = por %p36, %p37
      %p39 = scmp.ne.s32.totalorder %s28, %s31
      %p40 = scmp.eq.s32.totalorder %s23, 1
      %p41 = por %p39, %p40
      %p42 = scmp.ne.s32.totalorder %s31, %s32
      %p43 = scmp.eq.s32.totalorder %s23, 0
      %p44 = por %p42, %p43
      %p45 = scmp.ne.s32.totalorder %s31, %s32
      %p46 = scmp.eq.s32.totalorder %s24, 1
      %p47 = por %p45, %p46
      %p49 = scmp.ne.s32.totalorder %s32, %s48
      %p50 = scmp.eq.s32.totalorder %s24, 0
      %p51 = por %p49, %p50
      %s53 = sadd.s32 %s52, 1
      %p56 = scmp.eq.s32.totalorder %s18, 1
      %p57 = scmp.ne.s32.totalorder %s52, %s54
      %p58 = scmp.eq.s32.totalorder %s18, 0
      %p59 = por %p57, %p58
      %p60 = scmp.ne.s32.totalorder %s52, %s54
      %p61 = scmp.eq.s32.totalorder %s23, 1
      %p62 = por %p60, %p61
      %p63 = scmp.ne.s32.totalorder %s54, %s55
      %p64 = scmp.eq.s32.totalorder %s23, 0
      %p65 = por %p63, %p64
      %p66 = scmp.ne.s32.totalorder %s54, %s55
      %p67 = scmp.eq.s32.totalorder %s24, 1
      %p68 = por %p66, %p67
      %p70 = scmp.ne.s32.totalorder %s55, %s69
      %p71 = scmp.eq.s32.totalorder %s24, 0
      %p72 = por %p70, %p71
      %s74 = sadd.s32 %s73, 1
      %p77 = scmp.eq.s32.totalorder %s18, 1
      %p78 = scmp.ne.s32.totalorder %s73, %s75
      %p79 = scmp.eq.s32.totalorder %s18, 0
      %p80 = por %p78, %p79
      %p81 = scmp.ne.s32.totalorder %s73, %s75
      %p82 = scmp.eq.s32.totalorder %s23, 1
      %p83 = por %p81, %p82
      %p84 = scmp.ne.s32.totalorder %s75, %s76
      %p85 = scmp.eq.s32.totalorder %s23, 0
      %p86 = por %p84, %p85
      %p87 = scmp.ne.s32.totalorder %s75, %s76
      %p88 = scmp.eq.s32.totalorder %s24, 1
      %p89 = por %p87, %p88
      %p91 = scmp.ne.s32.totalorder %s76, %s90
      %p92 = scmp.eq.s32.totalorder %s24, 0
      %p93 = por %p91, %p92
      %s95 = sadd.s32 %s94, 1
      %p98 = scmp.eq.s32.totalorder %s18, 1
      %p99 = scmp.ne.s32.totalorder %s94, %s96
      %p100 = scmp.eq.s32.totalorder %s18, 0
      %p101 = por %p99, %p100
      %p102 = scmp.ne.s32.totalorder %s94, %s96
      %p103 = scmp.eq.s32.totalorder %s23, 1
      %p104 = por %p102, %p103
      %p105 = scmp.ne.s32.totalorder %s96, %s97
      %p106 = scmp.eq.s32.totalorder %s23, 0
      %p107 = por %p105, %p106
      %p108 = scmp.ne.s32.totalorder %s96, %s97
      %p109 = scmp.eq.s32.totalorder %s24, 1
      %p110 = por %p108, %p109
      %p112 = scmp.ne.s32.totalorder %s97, %s111
      %p113 = scmp.eq.s32.totalorder %s24, 0
      %p114 = por %p112, %p113
      %s115 = ssub.s32 %s18, %s25
      %p116 = scmp.eq.s32.totalorder %s115, 0
      %s118 = sadd.s32 %s117, 1
      %s119 = scalar_select %p116, %s117, %s118
      %p122 = pneg %p116
      %p123 = scmp.eq.s32.totalorder %s18, 1
      %p124 = por %p122, %p123
      %p125 = scmp.ne.s32.totalorder %s117, %s120
      %p126 = scmp.eq.s32.totalorder %s18, 0
      %p127 = por %p125, %p126
      %p128 = scmp.ne.s32.totalorder %s117, %s120
      %p129 = scmp.eq.s32.totalorder %s23, 1
      %p130 = por %p128, %p129
      %p131 = scmp.ne.s32.totalorder %s120, %s121
      %p132 = scmp.eq.s32.totalorder %s23, 0
      %p133 = por %p131, %p132
      %p134 = scmp.ne.s32.totalorder %s120, %s121
      %p135 = scmp.eq.s32.totalorder %s24, 1
      %p136 = por %p134, %p135
      %p138 = scmp.ne.s32.totalorder %s121, %s137
      %p139 = scmp.eq.s32.totalorder %s24, 0
      %p140 = por %p138, %p139
      %p141 = scmp.le.s32.totalorder 1, %s18
      %p142 = scmp.lt.s32.totalorder %s18, 3
      %p143 = pnand %p141, %p142
      %p144 = pneg %p143
      // Predicated region
      $region9: #{tpu_custom_call.1} parent=5 // pred_check
        _
      $region10: #{tpu_custom_call.1} parent=5 // pred_check_branch
        %146 = sbr.rel (%p143) target = $region12
      $region11: #{tpu_custom_call.1} parent=5 // pred_region
        %s147 = ssub.s32 %s18, 1
        // Predicated region
        $region13: #{tpu_custom_call.1} parent=11 // pred_check
          %p148 = pneg %p65
        $region14: #{tpu_custom_call.1} parent=11 // pred_check_branch
          %150 = sbr.rel (%p148) target = $region16
        $region15: #{tpu_custom_call.1} parent=11 // pred_region
          %s152 = ssub.s32 2048, 2048
          %153 = vsyncadd [#allocation7], %s152
          %s154 = sshll.u32 [#allocation6], 4
          %s155 = int_to_ptr.vmem [resolvable:$true] %s154
          %160 = dma.hbm_to_vmem [thread:$0]  %s1, 2048, %s155, [#allocation7], 128, 128, 8
        $region16: #{tpu_custom_call.1} parent=11 // pred_fallthru
          _
        // Predicated region
        $region17: #{tpu_custom_call.1} parent=11 // pred_check
          %p161 = pneg %p86
        $region18: #{tpu_custom_call.1} parent=11 // pred_check_branch
          %163 = sbr.rel (%p161) target = $region20
        $region19: #{tpu_custom_call.1} parent=11 // pred_region
          %s165 = ssub.s32 2048, 2048
          %166 = vsyncadd [#allocation7], %s165
          %s167 = sshll.u32 [#allocation8], 4
          %s168 = int_to_ptr.vmem [resolvable:$true] %s167
          %173 = dma.hbm_to_vmem [thread:$0]  %s2, 2048, %s168, [#allocation7], 128, 128, 8
        $region20: #{tpu_custom_call.1} parent=11 // pred_fallthru
          _
        // Predicated region
        $region21: #{tpu_custom_call.1} parent=11 // pred_check
          %p174 = pneg %p107
        $region22: #{tpu_custom_call.1} parent=11 // pred_check_branch
          %176 = sbr.rel (%p174) target = $region24
        $region23: #{tpu_custom_call.1} parent=11 // pred_region
          %s178 = ssub.s32 2048, 2048
          %179 = vsyncadd [#allocation10], %s178
          %s180 = sshll.u32 [#allocation9], 4
          %s181 = int_to_ptr.vmem [resolvable:$true] %s180
          %186 = dma.hbm_to_vmem [thread:$0]  %s3, 2048, %s181, [#allocation10], 128, 128, 8
        $region24: #{tpu_custom_call.1} parent=11 // pred_fallthru
          _
      $region12: #{tpu_custom_call.1} parent=5 // pred_fallthru
        _
      %p187 = scmp.lt.s32.totalorder %s18, 2
      // Predicated region
      $region25: #{tpu_custom_call.1} parent=5 // pred_check
        %p188 = pneg %p187
      $region26: #{tpu_custom_call.1} parent=5 // pred_check_branch
        %190 = sbr.rel (%p188) target = $region28
      $region27: #{tpu_custom_call.1} parent=5 // pred_region
        // Predicated region
        $region29: #{tpu_custom_call.1} parent=27 // pred_check
          %p191 = pneg %p38
        $region30: #{tpu_custom_call.1} parent=27 // pred_check_branch
          %193 = sbr.rel (%p191) target = $region32
        $region31: #{tpu_custom_call.1} parent=27 // pred_region
          %s194 = sand.u32 %s28, 1
          %s195 = scalar_lea.sflag [#allocation4], %s194
          %s196 = sand.u32 %s28, 1
          %s197 = smul.addr %s196, 128
          %s198 = scalar_lea.vmem [#allocation3], %s197
          %s199 = smul.u32 16, %s18
          %s201 = ssub.s32 2048, 2048
          %202 = vsyncadd %s195, %s201
          %s203 = smul.addr %s199, 128
          %s204 = scalar_lea.hbm %s0, %s203
          %s205 = sshll.u32 %s198, 4
          %s206 = int_to_ptr.vmem [resolvable:$true] %s205
          %211 = dma.hbm_to_vmem [thread:$0]  %s204, 2048, %s206, %s195, 128, 128, 8
        $region32: #{tpu_custom_call.1} parent=27 // pred_fallthru
          _
      $region28: #{tpu_custom_call.1} parent=5 // pred_fallthru
        _
      %p212 = scmp.le.s32.totalorder 1, %s18
      %p213 = scmp.lt.s32.totalorder %s18, 3
      %p214 = pnand %p212, %p213
      %p215 = pneg %p214
      // Predicated region
      $region33: #{tpu_custom_call.1} parent=5 // pred_check
        _
      $region34: #{tpu_custom_call.1} parent=5 // pred_check_branch
        %217 = sbr.rel (%p214) target = $region36
      $region35: #{tpu_custom_call.1} parent=5 // pred_region
        %s218 = ssub.s32 %s18, 1
        %s219 = sand.u32 %s31, 1
        %s220 = scalar_lea.sflag [#allocation4], %s219
        %s221 = sand.u32 %s31, 1
        %s222 = smul.addr %s221, 128
        %s223 = scalar_lea.vmem [#allocation3], %s222
        // Predicated region
        $region37: #{tpu_custom_call.1} parent=35 // pred_check
          %p224 = pneg %p44
        $region38: #{tpu_custom_call.1} parent=35 // pred_check_branch
          %226 = sbr.rel (%p224) target = $region40
        $region39: #{tpu_custom_call.1} parent=35 // pred_region
          %227 = dma.done %s220, 2048
        $region40: #{tpu_custom_call.1} parent=35 // pred_fallthru
          _
        // Predicated region
        $region41: #{tpu_custom_call.1} parent=35 // pred_check
          %p228 = pneg %p65
        $region42: #{tpu_custom_call.1} parent=35 // pred_check_branch
          %230 = sbr.rel (%p228) target = $region44
        $region43: #{tpu_custom_call.1} parent=35 // pred_region
          %231 = dma.done [#allocation7], 2048
        $region44: #{tpu_custom_call.1} parent=35 // pred_fallthru
          _
        // Predicated region
        $region45: #{tpu_custom_call.1} parent=35 // pred_check
          %p232 = pneg %p86
        $region46: #{tpu_custom_call.1} parent=35 // pred_check_branch
          %234 = sbr.rel (%p232) target = $region48
        $region47: #{tpu_custom_call.1} parent=35 // pred_region
          %235 = dma.done [#allocation7], 2048
        $region48: #{tpu_custom_call.1} parent=35 // pred_fallthru
          _
        // Predicated region
        $region49: #{tpu_custom_call.1} parent=35 // pred_check
          %p236 = pneg %p107
        $region50: #{tpu_custom_call.1} parent=35 // pred_check_branch
          %238 = sbr.rel (%p236) target = $region52
        $region51: #{tpu_custom_call.1} parent=35 // pred_region
          %239 = dma.done [#allocation10], 2048
        $region52: #{tpu_custom_call.1} parent=35 // pred_fallthru
          _
        %s240 = sand.u32 %s31, 1
        %s241 = scalar_lea.sflag [#allocation4], %s240
        %s242 = sand.u32 %s31, 1
        %s243 = smul.addr %s242, 128
        %s244 = scalar_lea.vmem [#allocation3], %s243
        %p245 = pneg %p44
        %p246 = pneg %p41
        %p247 = pneg %p65
        %p248 = pneg %p62
        %p249 = pneg %p86
        %p250 = pneg %p83
        %p251 = pneg %p107
        %p252 = pneg %p104
        %p253 = pneg %p133
        %p254 = pneg %p130
        %s255 = sand.u32 %s120, 1
        %s256 = scalar_lea.sflag [#allocation5], %s255
        %s257 = sand.u32 %s120, 1
        %s258 = smul.addr %s257, 128
        %s259 = scalar_lea.vmem [#allocation11], %s258
        %s260 = smul.u32 16, %s23
        %s261 = smul.u32 16, %s23
        %v262 = vld [vmem:[#allocation8] sm:$0xff]
        %v263 = vld [vmem:[#allocation8 + $0x8] sm:$0xff]
        %v264 = vld [vmem:[#allocation8 + $0x10] sm:$0xff]
        %v265 = vld [vmem:[#allocation8 + $0x18] sm:$0xff]
        %v266 = vld [vmem:[#allocation8 + $0x20] sm:$0xff]
        %v267 = vld [vmem:[#allocation8 + $0x28] sm:$0xff]
        %v268 = vld [vmem:[#allocation8 + $0x30] sm:$0xff]
        %v269 = vld [vmem:[#allocation8 + $0x38] sm:$0xff]
        %v270 = vld [vmem:[#allocation8 + $0x40] sm:$0xff]
        %v271 = vld [vmem:[#allocation8 + $0x48] sm:$0xff]
        %v272 = vld [vmem:[#allocation8 + $0x50] sm:$0xff]
        %v273 = vld [vmem:[#allocation8 + $0x58] sm:$0xff]
        %v274 = vld [vmem:[#allocation8 + $0x60] sm:$0xff]
        %v275 = vld [vmem:[#allocation8 + $0x68] sm:$0xff]
        %v276 = vld [vmem:[#allocation8 + $0x70] sm:$0xff]
        %v277 = vld [vmem:[#allocation8 + $0x78] sm:$0xff]
        %v278 = vld [vmem:[#allocation6] sm:$0xff]
        %v279 = vld [vmem:[#allocation6 + $0x8] sm:$0xff]
        %v280 = vld [vmem:[#allocation6 + $0x10] sm:$0xff]
        %v281 = vld [vmem:[#allocation6 + $0x18] sm:$0xff]
        %v282 = vld [vmem:[#allocation6 + $0x20] sm:$0xff]
        %v283 = vld [vmem:[#allocation6 + $0x28] sm:$0xff]
        %v284 = vld [vmem:[#allocation6 + $0x30] sm:$0xff]
        %v285 = vld [vmem:[#allocation6 + $0x38] sm:$0xff]
        %v286 = vld [vmem:[#allocation6 + $0x40] sm:$0xff]
        %v287 = vld [vmem:[#allocation6 + $0x48] sm:$0xff]
        %v288 = vld [vmem:[#allocation6 + $0x50] sm:$0xff]
        %v289 = vld [vmem:[#allocation6 + $0x58] sm:$0xff]
        %v290 = vld [vmem:[#allocation6 + $0x60] sm:$0xff]
        %v291 = vld [vmem:[#allocation6 + $0x68] sm:$0xff]
        %v292 = vld [vmem:[#allocation6 + $0x70] sm:$0xff]
        %v293 = vld [vmem:[#allocation6 + $0x78] sm:$0xff]
        %v294 = vld [vmem:[#allocation9] sm:$0xff]
        %v295 = vld [vmem:[#allocation9 + $0x8] sm:$0xff]
        %v296 = vld [vmem:[#allocation9 + $0x10] sm:$0xff]
        %v297 = vld [vmem:[#allocation9 + $0x18] sm:$0xff]
        %v298 = vld [vmem:[#allocation9 + $0x20] sm:$0xff]
        %v299 = vld [vmem:[#allocation9 + $0x28] sm:$0xff]
        %v300 = vld [vmem:[#allocation9 + $0x30] sm:$0xff]
        %v301 = vld [vmem:[#allocation9 + $0x38] sm:$0xff]
        %v302 = vld [vmem:[#allocation9 + $0x40] sm:$0xff]
        %v303 = vld [vmem:[#allocation9 + $0x48] sm:$0xff]
        %v304 = vld [vmem:[#allocation9 + $0x50] sm:$0xff]
        %v305 = vld [vmem:[#allocation9 + $0x58] sm:$0xff]
        %v306 = vld [vmem:[#allocation9 + $0x60] sm:$0xff]
        %v307 = vld [vmem:[#allocation9 + $0x68] sm:$0xff]
        %v308 = vld [vmem:[#allocation9 + $0x70] sm:$0xff]
        %v309 = vld [vmem:[#allocation9 + $0x78] sm:$0xff]
        %v310 = vld [vmem:[%s223] sm:$0xff]
        %v311 = vld [vmem:[%s223 + $0x8] sm:$0xff]
        %v312 = vld [vmem:[%s223 + $0x10] sm:$0xff]
        %v313 = vld [vmem:[%s223 + $0x18] sm:$0xff]
        %v314 = vld [vmem:[%s223 + $0x20] sm:$0xff]
        %v315 = vld [vmem:[%s223 + $0x28] sm:$0xff]
        %v316 = vld [vmem:[%s223 + $0x30] sm:$0xff]
        %v317 = vld [vmem:[%s223 + $0x38] sm:$0xff]
        %v318 = vld [vmem:[%s223 + $0x40] sm:$0xff]
        %v319 = vld [vmem:[%s223 + $0x48] sm:$0xff]
        %v320 = vld [vmem:[%s223 + $0x50] sm:$0xff]
        %v321 = vld [vmem:[%s223 + $0x58] sm:$0xff]
        %v322 = vld [vmem:[%s223 + $0x60] sm:$0xff]
        %v323 = vld [vmem:[%s223 + $0x68] sm:$0xff]
        %v324 = vld [vmem:[%s223 + $0x70] sm:$0xff]
        %v325 = vld [vmem:[%s223 + $0x78] sm:$0xff]
        %326 = vmatprep.subr.mxu0 0.0
        %327 = vmatpush1.msra.mxu0 %v278
        %328 = vmatprep.subr.mxu0 0.0
        %329 = vmatpush1.msra.mxu0 %v279
        %330 = vmatprep.subr.mxu0 0.0
        %331 = vmatpush1.msra.mxu0 %v280
        %332 = vmatprep.subr.mxu0 0.0
        %333 = vmatpush1.msra.mxu0 %v281
        %334 = vmatprep.subr.mxu0 0.0
        %335 = vmatpush1.msra.mxu0 %v282
        %336 = vmatprep.subr.mxu0 0.0
        %337 = vmatpush1.msra.mxu0 %v283
        %338 = vmatprep.subr.mxu0 0.0
        %339 = vmatpush1.msra.mxu0 %v284
        %340 = vmatprep.subr.mxu0 0.0
        %341 = vmatpush1.msra.mxu0 %v285
        %342 = vmatprep.subr.mxu0 0.0
        %343 = vmatpush1.msra.mxu0 %v286
        %344 = vmatprep.subr.mxu0 0.0
        %345 = vmatpush1.msra.mxu0 %v287
        %346 = vmatprep.subr.mxu0 0.0
        %347 = vmatpush1.msra.mxu0 %v288
        %348 = vmatprep.subr.mxu0 0.0
        %349 = vmatpush1.msra.mxu0 %v289
        %350 = vmatprep.subr.mxu0 0.0
        %351 = vmatpush1.msra.mxu0 %v290
        %352 = vmatprep.subr.mxu0 0.0
        %353 = vmatpush1.msra.mxu0 %v291
        %354 = vmatprep.subr.mxu0 0.0
        %355 = vmatpush1.msra.mxu0 %v292
        %356 = vmatprep.subr.mxu0 0.0
        %357 = vmatpush1.msra.mxu0 %v293
        %358 = vmatprep.subr.mxu0 0.0
        %359 = vmatpush1.msra.mxu0 0.0
        %360 = vmatprep.subr.mxu0 0.0
        %361 = vmatpush1.msra.mxu0 0.0
        %362 = vmatprep.subr.mxu0 0.0
        %363 = vmatpush1.msra.mxu0 0.0
        %364 = vmatprep.subr.mxu0 0.0
        %365 = vmatpush1.msra.mxu0 0.0
        %366 = vmatprep.subr.mxu0 0.0
        %367 = vmatpush1.msra.mxu0 0.0
        %368 = vmatprep.subr.mxu0 0.0
        %369 = vmatpush1.msra.mxu0 0.0
        %370 = vmatprep.subr.mxu0 0.0
        %371 = vmatpush1.msra.mxu0 0.0
        %372 = vmatprep.subr.mxu0 0.0
        %373 = vmatpush1.msra.mxu0 0.0
        %374 = vmatprep.subr.mxu0 0.0
        %375 = vmatpush1.msra.mxu0 0.0
        %376 = vmatprep.subr.mxu0 0.0
        %377 = vmatpush1.msra.mxu0 0.0
        %378 = vmatprep.subr.mxu0 0.0
        %379 = vmatpush1.msra.mxu0 0.0
        %380 = vmatprep.subr.mxu0 0.0
        %381 = vmatpush1.msra.mxu0 0.0
        %382 = vmatprep.subr.mxu0 0.0
        %383 = vmatpush1.msra.mxu0 0.0
        %384 = vmatprep.subr.mxu0 0.0
        %385 = vmatpush1.msra.mxu0 0.0
        %386 = vmatprep.subr.mxu0 0.0
        %387 = vmatpush1.msra.mxu0 0.0
        %388 = vmatprep.subr.mxu0 0.0
        %389 = vmatpush1.msra.mxu0 0.0
        %390 = vmatprep.mubr.f32.mxu0 0.0
        %391 = vmatmul.mubr.f32.gmra.mrb[0].mxu0 %v310
        %v392 = vpop.f32.mrb[0].mxu0
        %v393 = vadd.f32 0.0, %v392
        %v394 = vpop.f32.mrb[0].mxu0
        %395 = vmatprep.mubr.f32.mxu0 0.0
        %396 = vmatmul.mubr.f32.gmra.mrb[0].mxu0 %v311
        %v397 = vpop.f32.mrb[0].mxu0
        %v398 = vadd.f32 0.0, %v397
        %v399 = vpop.f32.mrb[0].mxu0
        %400 = vmatprep.mubr.f32.mxu0 0.0
        %401 = vmatmul.mubr.f32.gmra.mrb[0].mxu0 %v312
        %v402 = vpop.f32.mrb[0].mxu0
        %v403 = vadd.f32 0.0, %v402
        %v404 = vpop.f32.mrb[0].mxu0
        %405 = vmatprep.mubr.f32.mxu0 0.0
        %406 = vmatmul.mubr.f32.gmra.mrb[0].mxu0 %v313
        %v407 = vpop.f32.mrb[0].mxu0
        %v408 = vadd.f32 0.0, %v407
        %v409 = vpop.f32.mrb[0].mxu0
        %410 = vmatprep.mubr.f32.mxu0 0.0
        %411 = vmatmul.mubr.f32.gmra.mrb[0].mxu0 %v314
        %v412 = vpop.f32.mrb[0].mxu0
        %v413 = vadd.f32 0.0, %v412
        %v414 = vpop.f32.mrb[0].mxu0
        %415 = vmatprep.mubr.f32.mxu0 0.0
        %416 = vmatmul.mubr.f32.gmra.mrb[0].mxu0 %v315
        %v417 = vpop.f32.mrb[0].mxu0
        %v418 = vadd.f32 0.0, %v417
        %v419 = vpop.f32.mrb[0].mxu0
        %420 = vmatprep.mubr.f32.mxu0 0.0
        %421 = vmatmul.mubr.f32.gmra.mrb[0].mxu0 %v316
        %v422 = vpop.f32.mrb[0].mxu0
        %v423 = vadd.f32 0.0, %v422
        %v424 = vpop.f32.mrb[0].mxu0
        %425 = vmatprep.mubr.f32.mxu0 0.0
        %426 = vmatmul.mubr.f32.gmra.mrb[0].mxu0 %v317
        %v427 = vpop.f32.mrb[0].mxu0
        %v428 = vadd.f32 0.0, %v427
        %v429 = vpop.f32.mrb[0].mxu0
        %430 = vmatprep.mubr.f32.mxu0 0.0
        %431 = vmatmul.mubr.f32.gmra.mrb[0].mxu0 %v318
        %v432 = vpop.f32.mrb[0].mxu0
        %v433 = vadd.f32 0.0, %v432
        %v434 = vpop.f32.mrb[0].mxu0
        %435 = vmatprep.mubr.f32.mxu0 0.0
        %436 = vmatmul.mubr.f32.gmra.mrb[0].mxu0 %v319
        %v437 = vpop.f32.mrb[0].mxu0
        %v438 = vadd.f32 0.0, %v437
        %v439 = vpop.f32.mrb[0].mxu0
        %440 = vmatprep.mubr.f32.mxu0 0.0
        %441 = vmatmul.mubr.f32.gmra.mrb[0].mxu0 %v320
        %v442 = vpop.f32.mrb[0].mxu0
        %v443 = vadd.f32 0.0, %v442
        %v444 = vpop.f32.mrb[0].mxu0
        %445 = vmatprep.mubr.f32.mxu0 0.0
        %446 = vmatmul.mubr.f32.gmra.mrb[0].mxu0 %v321
        %v447 = vpop.f32.mrb[0].mxu0
        %v448 = vadd.f32 0.0, %v447
        %v449 = vpop.f32.mrb[0].mxu0
        %450 = vmatprep.mubr.f32.mxu0 0.0
        %451 = vmatmul.mubr.f32.gmra.mrb[0].mxu0 %v322
        %v452 = vpop.f32.mrb[0].mxu0
        %v453 = vadd.f32 0.0, %v452
        %v454 = vpop.f32.mrb[0].mxu0
        %455 = vmatprep.mubr.f32.mxu0 0.0
        %456 = vmatmul.mubr.f32.gmra.mrb[0].mxu0 %v323
        %v457 = vpop.f32.mrb[0].mxu0
        %v458 = vadd.f32 0.0, %v457
        %v459 = vpop.f32.mrb[0].mxu0
        %460 = vmatprep.mubr.f32.mxu0 0.0
        %461 = vmatmul.mubr.f32.gmra.mrb[0].mxu0 %v324
        %v462 = vpop.f32.mrb[0].mxu0
        %v463 = vadd.f32 0.0, %v462
        %v464 = vpop.f32.mrb[0].mxu0
        %465 = vmatprep.mubr.f32.mxu0 0.0
        %466 = vmatmul.mubr.f32.gmra.mrb[0].mxu0 %v325
        %v467 = vpop.f32.mrb[0].mxu0
        %v468 = vadd.f32 0.0, %v467
        %v469 = vpop.f32.mrb[0].mxu0
        %470 = vdwg.mxu0
        %471 = vst [vmem:[#allocation2] sm:$0xff] %v393
        %472 = vst [vmem:[#allocation2 + $0x8] sm:$0xff] %v398
        %473 = vst [vmem:[#allocation2 + $0x10] sm:$0xff] %v403
        %474 = vst [vmem:[#allocation2 + $0x18] sm:$0xff] %v408
        %475 = vst [vmem:[#allocation2 + $0x20] sm:$0xff] %v413
        %476 = vst [vmem:[#allocation2 + $0x28] sm:$0xff] %v418
        %477 = vst [vmem:[#allocation2 + $0x30] sm:$0xff] %v423
        %478 = vst [vmem:[#allocation2 + $0x38] sm:$0xff] %v428
        %479 = vst [vmem:[#allocation2 + $0x40] sm:$0xff] %v433
        %480 = vst [vmem:[#allocation2 + $0x48] sm:$0xff] %v438
        %481 = vst [vmem:[#allocation2 + $0x50] sm:$0xff] %v443
        %482 = vst [vmem:[#allocation2 + $0x58] sm:$0xff] %v448
        %483 = vst [vmem:[#allocation2 + $0x60] sm:$0xff] %v453
        %484 = vst [vmem:[#allocation2 + $0x68] sm:$0xff] %v458
        %485 = vst [vmem:[#allocation2 + $0x70] sm:$0xff] %v463
        %486 = vst [vmem:[#allocation2 + $0x78] sm:$0xff] %v468
        %v487 = vld [vmem:[#allocation2] sm:$0xff]
        %v488 = vld [vmem:[#allocation2 + $0x8] sm:$0xff]
        %v489 = vld [vmem:[#allocation2 + $0x10] sm:$0xff]
        %v490 = vld [vmem:[#allocation2 + $0x18] sm:$0xff]
        %v491 = vld [vmem:[#allocation2 + $0x20] sm:$0xff]
        %v492 = vld [vmem:[#allocation2 + $0x28] sm:$0xff]
        %v493 = vld [vmem:[#allocation2 + $0x30] sm:$0xff]
        %v494 = vld [vmem:[#allocation2 + $0x38] sm:$0xff]
        %v495 = vld [vmem:[#allocation2 + $0x40] sm:$0xff]
        %v496 = vld [vmem:[#allocation2 + $0x48] sm:$0xff]
        %v497 = vld [vmem:[#allocation2 + $0x50] sm:$0xff]
        %v498 = vld [vmem:[#allocation2 + $0x58] sm:$0xff]
        %v499 = vld [vmem:[#allocation2 + $0x60] sm:$0xff]
        %v500 = vld [vmem:[#allocation2 + $0x68] sm:$0xff]
        %v501 = vld [vmem:[#allocation2 + $0x70] sm:$0xff]
        %v502 = vld [vmem:[#allocation2 + $0x78] sm:$0xff]
        %503 = vmatprep.subr.mxu0 0.0
        %504 = vmatpush1.msra.mxu0 %v487
        %505 = vmatprep.subr.mxu0 0.0
        %506 = vmatpush1.msra.mxu0 %v488
        %507 = vmatprep.subr.mxu0 0.0
        %508 = vmatpush1.msra.mxu0 %v489
        %509 = vmatprep.subr.mxu0 0.0
        %510 = vmatpush1.msra.mxu0 %v490
        %511 = vmatprep.subr.mxu0 0.0
        %512 = vmatpush1.msra.mxu0 %v491
        %513 = vmatprep.subr.mxu0 0.0
        %514 = vmatpush1.msra.mxu0 %v492
        %515 = vmatprep.subr.mxu0 0.0
        %516 = vmatpush1.msra.mxu0 %v493
        %517 = vmatprep.subr.mxu0 0.0
        %518 = vmatpush1.msra.mxu0 %v494
        %519 = vmatprep.subr.mxu0 0.0
        %520 = vmatpush1.msra.mxu0 %v495
        %521 = vmatprep.subr.mxu0 0.0
        %522 = vmatpush1.msra.mxu0 %v496
        %523 = vmatprep.subr.mxu0 0.0
        %524 = vmatpush1.msra.mxu0 %v497
        %525 = vmatprep.subr.mxu0 0.0
        %526 = vmatpush1.msra.mxu0 %v498
        %527 = vmatprep.subr.mxu0 0.0
        %528 = vmatpush1.msra.mxu0 %v499
        %529 = vmatprep.subr.mxu0 0.0
        %530 = vmatpush1.msra.mxu0 %v500
        %531 = vmatprep.subr.mxu0 0.0
        %532 = vmatpush1.msra.mxu0 %v501
        %533 = vmatprep.subr.mxu0 0.0
        %534 = vmatpush1.msra.mxu0 %v502
        %535 = vmatprep.subr.mxu0 0.0
        %536 = vmatpush1.msra.mxu0 0.0
        %537 = vmatprep.subr.mxu0 0.0
        %538 = vmatpush1.msra.mxu0 0.0
        %539 = vmatprep.subr.mxu0 0.0
        %540 = vmatpush1.msra.mxu0 0.0
        %541 = vmatprep.subr.mxu0 0.0
        %542 = vmatpush1.msra.mxu0 0.0
        %543 = vmatprep.subr.mxu0 0.0
        %544 = vmatpush1.msra.mxu0 0.0
        %545 = vmatprep.subr.mxu0 0.0
        %546 = vmatpush1.msra.mxu0 0.0
        %547 = vmatprep.subr.mxu0 0.0
        %548 = vmatpush1.msra.mxu0 0.0
        %549 = vmatprep.subr.mxu0 0.0
        %550 = vmatpush1.msra.mxu0 0.0
        %551 = vmatprep.subr.mxu0 0.0
        %552 = vmatpush1.msra.mxu0 0.0
        %553 = vmatprep.subr.mxu0 0.0
        %554 = vmatpush1.msra.mxu0 0.0
        %555 = vmatprep.subr.mxu0 0.0
        %556 = vmatpush1.msra.mxu0 0.0
        %557 = vmatprep.subr.mxu0 0.0
        %558 = vmatpush1.msra.mxu0 0.0
        %559 = vmatprep.subr.mxu0 0.0
        %560 = vmatpush1.msra.mxu0 0.0
        %561 = vmatprep.subr.mxu0 0.0
        %562 = vmatpush1.msra.mxu0 0.0
        %563 = vmatprep.subr.mxu0 0.0
        %564 = vmatpush1.msra.mxu0 0.0
        %565 = vmatprep.subr.mxu0 0.0
        %566 = vmatpush1.msra.mxu0 0.0
        %567 = vmatprep.mubr.f32.mxu0 0.0
        %568 = vmatmul.mubr.f32.gmra.mrb[0].mxu0 %v262
        %v569 = vpop.f32.mrb[0].mxu0
        %v570 = vadd.f32 %v294, %v569
        %v571 = vpop.f32.mrb[0].mxu0
        %572 = vmatprep.mubr.f32.mxu0 0.0
        %573 = vmatmul.mubr.f32.gmra.mrb[0].mxu0 %v263
        %v574 = vpop.f32.mrb[0].mxu0
        %v575 = vadd.f32 %v295, %v574
        %v576 = vpop.f32.mrb[0].mxu0
        %577 = vmatprep.mubr.f32.mxu0 0.0
        %578 = vmatmul.mubr.f32.gmra.mrb[0].mxu0 %v264
        %v579 = vpop.f32.mrb[0].mxu0
        %v580 = vadd.f32 %v296, %v579
        %v581 = vpop.f32.mrb[0].mxu0
        %582 = vmatprep.mubr.f32.mxu0 0.0
        %583 = vmatmul.mubr.f32.gmra.mrb[0].mxu0 %v265
        %v584 = vpop.f32.mrb[0].mxu0
        %v585 = vadd.f32 %v297, %v584
        %v586 = vpop.f32.mrb[0].mxu0
        %587 = vmatprep.mubr.f32.mxu0 0.0
        %588 = vmatmul.mubr.f32.gmra.mrb[0].mxu0 %v266
        %v589 = vpop.f32.mrb[0].mxu0
        %v590 = vadd.f32 %v298, %v589
        %v591 = vpop.f32.mrb[0].mxu0
        %592 = vmatprep.mubr.f32.mxu0 0.0
        %593 = vmatmul.mubr.f32.gmra.mrb[0].mxu0 %v267
        %v594 = vpop.f32.mrb[0].mxu0
        %v595 = vadd.f32 %v299, %v594
        %v596 = vpop.f32.mrb[0].mxu0
        %597 = vmatprep.mubr.f32.mxu0 0.0
        %598 = vmatmul.mubr.f32.gmra.mrb[0].mxu0 %v268
        %v599 = vpop.f32.mrb[0].mxu0
        %v600 = vadd.f32 %v300, %v599
        %v601 = vpop.f32.mrb[0].mxu0
        %602 = vmatprep.mubr.f32.mxu0 0.0
        %603 = vmatmul.mubr.f32.gmra.mrb[0].mxu0 %v269
        %v604 = vpop.f32.mrb[0].mxu0
        %v605 = vadd.f32 %v301, %v604
        %v606 = vpop.f32.mrb[0].mxu0
        %607 = vmatprep.mubr.f32.mxu0 0.0
        %608 = vmatmul.mubr.f32.gmra.mrb[0].mxu0 %v270
        %v609 = vpop.f32.mrb[0].mxu0
        %v610 = vadd.f32 %v302, %v609
        %v611 = vpop.f32.mrb[0].mxu0
        %612 = vmatprep.mubr.f32.mxu0 0.0
        %613 = vmatmul.mubr.f32.gmra.mrb[0].mxu0 %v271
        %v614 = vpop.f32.mrb[0].mxu0
        %v615 = vadd.f32 %v303, %v614
        %v616 = vpop.f32.mrb[0].mxu0
        %617 = vmatprep.mubr.f32.mxu0 0.0
        %618 = vmatmul.mubr.f32.gmra.mrb[0].mxu0 %v272
        %v619 = vpop.f32.mrb[0].mxu0
        %v620 = vadd.f32 %v304, %v619
        %v621 = vpop.f32.mrb[0].mxu0
        %622 = vmatprep.mubr.f32.mxu0 0.0
        %623 = vmatmul.mubr.f32.gmra.mrb[0].mxu0 %v273
        %v624 = vpop.f32.mrb[0].mxu0
        %v625 = vadd.f32 %v305, %v624
        %v626 = vpop.f32.mrb[0].mxu0
        %627 = vmatprep.mubr.f32.mxu0 0.0
        %628 = vmatmul.mubr.f32.gmra.mrb[0].mxu0 %v274
        %v629 = vpop.f32.mrb[0].mxu0
        %v630 = vadd.f32 %v306, %v629
        %v631 = vpop.f32.mrb[0].mxu0
        %632 = vmatprep.mubr.f32.mxu0 0.0
        %633 = vmatmul.mubr.f32.gmra.mrb[0].mxu0 %v275
        %v634 = vpop.f32.mrb[0].mxu0
        %v635 = vadd.f32 %v307, %v634
        %v636 = vpop.f32.mrb[0].mxu0
        %637 = vmatprep.mubr.f32.mxu0 0.0
        %638 = vmatmul.mubr.f32.gmra.mrb[0].mxu0 %v276
        %v639 = vpop.f32.mrb[0].mxu0
        %v640 = vadd.f32 %v308, %v639
        %v641 = vpop.f32.mrb[0].mxu0
        %642 = vmatprep.mubr.f32.mxu0 0.0
        %643 = vmatmul.mubr.f32.gmra.mrb[0].mxu0 %v277
        %v644 = vpop.f32.mrb[0].mxu0
        %v645 = vadd.f32 %v309, %v644
        %v646 = vpop.f32.mrb[0].mxu0
        %647 = vdwg.mxu0
        %648 = vst [vmem:[%s259] sm:$0xff] %v570
        %649 = vst [vmem:[%s259 + $0x8] sm:$0xff] %v575
        %650 = vst [vmem:[%s259 + $0x10] sm:$0xff] %v580
        %651 = vst [vmem:[%s259 + $0x18] sm:$0xff] %v585
        %652 = vst [vmem:[%s259 + $0x20] sm:$0xff] %v590
        %653 = vst [vmem:[%s259 + $0x28] sm:$0xff] %v595
        %654 = vst [vmem:[%s259 + $0x30] sm:$0xff] %v600
        %655 = vst [vmem:[%s259 + $0x38] sm:$0xff] %v605
        %656 = vst [vmem:[%s259 + $0x40] sm:$0xff] %v610
        %657 = vst [vmem:[%s259 + $0x48] sm:$0xff] %v615
        %658 = vst [vmem:[%s259 + $0x50] sm:$0xff] %v620
        %659 = vst [vmem:[%s259 + $0x58] sm:$0xff] %v625
        %660 = vst [vmem:[%s259 + $0x60] sm:$0xff] %v630
        %661 = vst [vmem:[%s259 + $0x68] sm:$0xff] %v635
        %662 = vst [vmem:[%s259 + $0x70] sm:$0xff] %v640
        %663 = vst [vmem:[%s259 + $0x78] sm:$0xff] %v645
        %s664 = sand.u32 %s120, 1
        %s665 = scalar_lea.sflag [#allocation5], %s664
        %s666 = sand.u32 %s120, 1
        %s667 = smul.addr %s666, 128
        %s668 = scalar_lea.vmem [#allocation11], %s667
        // Predicated region
        $region53: #{tpu_custom_call.1} parent=35 // pred_check
          %p669 = pneg %p130
        $region54: #{tpu_custom_call.1} parent=35 // pred_check_branch
          %671 = sbr.rel (%p669) target = $region56
        $region55: #{tpu_custom_call.1} parent=35 // pred_region
          %s672 = smul.u32 16, %s23
          %s674 = ssub.s32 2048, 2048
          %675 = vsyncadd %s665, %s674
          %s676 = smul.addr %s672, 128
          %s677 = scalar_lea.hbm %s4, %s676
          %s678 = sshll.u32 %s668, 4
          %s679 = int_to_ptr.vmem [resolvable:$true] %s678
          %684 = dma.vmem_to_hbm [thread:$0]  %s679, 2048, %s677, %s665, 128, 128, 8
        $region56: #{tpu_custom_call.1} parent=35 // pred_fallthru
          _
      $region36: #{tpu_custom_call.1} parent=5 // pred_fallthru
        _
      %p685 = scmp.le.s32.totalorder 2, %s18
      // Predicated region
      $region57: #{tpu_custom_call.1} parent=5 // pred_check
        %p686 = pneg %p685
      $region58: #{tpu_custom_call.1} parent=5 // pred_check_branch
        %688 = sbr.rel (%p686) target = $region60
      $region59: #{tpu_custom_call.1} parent=5 // pred_region
        %s689 = ssub.s32 %s18, 2
        // Predicated region
        $region61: #{tpu_custom_call.1} parent=59 // pred_check
          %p690 = pneg %p136
        $region62: #{tpu_custom_call.1} parent=59 // pred_check_branch
          %692 = sbr.rel (%p690) target = $region64
        $region63: #{tpu_custom_call.1} parent=59 // pred_region
          %s693 = sand.u32 %s121, 1
          %s694 = scalar_lea.sflag [#allocation5], %s693
          %s695 = sand.u32 %s121, 1
          %s696 = smul.addr %s695, 128
          %s697 = scalar_lea.vmem [#allocation11], %s696
          %698 = dma.done %s694, 2048
        $region64: #{tpu_custom_call.1} parent=59 // pred_fallthru
          _
      $region60: #{tpu_custom_call.1} parent=5 // pred_fallthru
        _
    $region6: #{tpu_custom_call.1} parent=1 // loop_footer
      %s22 = sadd.s32 1, %s18
    $region7: #{tpu_custom_call.1} parent=1 // loop_footer_branch
      %17 = sbr.rel target = $region3
    $region8: #{tpu_custom_call.1} parent=1 // loop_exit
      _
    %699 = vsyncpa [#allocation4], 1
    %s700 = scalar_lea.sflag [#allocation4], 1
    %701 = vsyncpa %s700, 1
    %702 = vsyncpa [#allocation7], 1
    %703 = vsyncpa [#allocation10], 1
    %704 = vsyncpa [#allocation5], 1
    %s705 = scalar_lea.sflag [#allocation5], 1
    %706 = vsyncpa %s705, 1

</llo_original>
